<compile_context>
chip_gen: v7x
topology: tpu7x:2x2x1
jax: 0.10.0
libtpu: 0.0.40
codegen_flags: <defaults>
</compile_context>

<pallas_src>
import jax
import jax.numpy as jnp
from jax.experimental import pallas as pl
from jax.experimental.pallas import tpu as pltpu

# ---- static QLayer config ---------------------------------------------------
INPUT_WIDTH = 8       # bits
OUTPUT_WIDTH = 8      # bits
C_IN = 4
C_OUT = 8
KH = KW = 3
PAD = 1


def _round_up(x, m):
    return (x + m - 1) // m * m


# ---- Pallas kernel: mask once -> 9 shifted-slab MXU matmuls -> bias -> trunc -> mask ----
def _make_qconv_kernel(wp, l_out):
    """wp: padded width (lane shift per kernel row); l_out: lane-dense output length."""
    shifts = tuple(kh * wp + kw for kh in range(KH) for kw in range(KW))  # static lane offsets

    def kernel(x_ref, w_ref, b_ref, o_ref):
        in_mask = jnp.int32((1 << INPUT_WIDTH) - 1)
        out_mask = jnp.int32((1 << OUTPUT_WIDTH) - 1)

        # Input bit-truncation + int32 -> f32 cast, done once over the resident slab.
        xf = jnp.bitwise_and(x_ref[...], in_mask).astype(jnp.float32)     # [C_IN, l_in]

        # 9 kernel taps: each is a static lane-offset window of the masked slab,
        # fed to a [C_OUT, C_IN] @ [C_IN, l_out] MXU matmul, accumulated in f32.
        acc = None
        for tap, s in enumerate(shifts):
            xs = xf[:, s:s + l_out]                                       # [C_IN, l_out]
            part = jnp.dot(w_ref[tap], xs, preferred_element_type=jnp.float32)
            acc = part if acc is None else acc + part

        # Bias (broadcast add along lanes), torch .int() truncation toward zero,
        # output bit-mask, single unmasked lane-dense store.
        acc = acc + b_ref[...]                                            # [C_OUT, l_out]
        o_ref[...] = jnp.bitwise_and(acc.astype(jnp.int32), out_mask)

    return kernel


def qlayer_conv2d_truncate(x_nchw_int, weight_oihw, bias):
    """x_nchw_int: int32 [N, C_IN, H, W] -> int32 [N, C_OUT, H, W]."""
    N, C, H, W = x_nchw_int.shape
    assert C == C_IN
    Hp, Wp = H + 2 * PAD, W + 2 * PAD

    # --- glue (tiny, layout only): zero-pad spatially, flatten to channel-major [C_IN, L] ---
    x_pad = jnp.pad(x_nchw_int, ((0, 0), (0, 0), (PAD, PAD), (PAD, PAD)))   # [N, C_IN, Hp, Wp]
    x_flat = jnp.transpose(x_pad, (1, 0, 2, 3)).reshape(C_IN, N * Hp * Wp)  # [C_IN, L]
    L = N * Hp * Wp

    max_shift = (KH - 1) * Wp + (KW - 1)
    l_out = _round_up(L, 128)              # lane-dense output length (multiple of 128)
    l_in = _round_up(l_out + max_shift, 128)
    x_flat = jnp.pad(x_flat, ((0, 0), (0, l_in - L)))                       # [C_IN, l_in]

    # weights: torch [C_OUT, C_IN, KH, KW] -> per-tap [KH*KW, C_OUT, C_IN]
    w_taps = jnp.transpose(weight_oihw, (2, 3, 0, 1)).reshape(KH * KW, C_OUT, C_IN)
    w_taps = w_taps.astype(jnp.float32)
    b2d = bias.reshape(C_OUT, 1).astype(jnp.float32)

    out_t = pl.pallas_call(
        _make_qconv_kernel(Wp, l_out),
        out_shape=jax.ShapeDtypeStruct((C_OUT, l_out), jnp.int32),
        grid_spec=pltpu.PrefetchScalarGridSpec(
            num_scalar_prefetch=0,
            grid=(1,),  # whole problem fits one resident tile; avoids per-step grid overhead
            in_specs=[
                pl.BlockSpec((C_IN, l_in), lambda i: (0, 0)),               # resident input slab
                pl.BlockSpec((KH * KW, C_OUT, C_IN), lambda i: (0, 0, 0)),  # resident weights
                pl.BlockSpec((C_OUT, 1), lambda i: (0, 0)),                 # resident bias
            ],
            out_specs=pl.BlockSpec((C_OUT, l_out), lambda i: (0, 0)),       # lane-dense output
        ),
        compiler_params=pltpu.CompilerParams(dimension_semantics=("arbitrary",)),
    )(x_flat, w_taps, b2d)

    # out_t[:, n*Hp*Wp + ho*Wp + wo] is output (n, :, ho, wo); drop pad rows/cols & pad lanes.
    out = out_t[:, :L].reshape(C_OUT, N, Hp, Wp)[:, :, :H, :W]
    return jnp.transpose(out, (1, 0, 2, 3))                                 # NCHW int32


# ---- pure-JAX reference (same per-tap accumulation order) for a sanity check -----------
def _reference(x_nchw_int, weight_oihw, bias):
    N, C, H, W = x_nchw_int.shape
    qin = jnp.bitwise_and(x_nchw_int, (1 << INPUT_WIDTH) - 1).astype(jnp.float32)
    xp = jnp.pad(qin, ((0, 0), (0, 0), (PAD, PAD), (PAD, PAD)))
    acc = jnp.zeros((N, C_OUT, H, W), jnp.float32)
    for kh in range(KH):
        for kw in range(KW):
            win = xp[:, :, kh:kh + H, kw:kw + W]                            # [N, C_IN, H, W]
            w_tap = weight_oihw[:, :, kh, kw].astype(jnp.float32)           # [C_OUT, C_IN]
            acc = acc + (w_tap[None, :, :, None, None] * win[:, None, :, :, :]).sum(axis=2)
    acc = acc + bias.astype(jnp.float32).reshape(1, C_OUT, 1, 1)
    out = acc.astype(jnp.int32)
    return jnp.bitwise_and(out, (1 << OUTPUT_WIDTH) - 1)


if __name__ == "__main__":
    key = jax.random.PRNGKey(0)
    kx, kw_, kb = jax.random.split(key, 3)

    # small shapes consistent with the module: batch=2, channels=4, spatial=16
    N, H, W = 2, 16, 16
    x = jax.random.randint(kx, (N, C_IN, H, W), 0, 1024, dtype=jnp.int32)   # NCHW int input
    weight = jax.random.uniform(kw_, (C_OUT, C_IN, KH, KW), jnp.float32, -0.5, 0.5)
    bias = jax.random.uniform(kb, (C_OUT,), jnp.float32, -0.5, 0.5)

    fn = jax.jit(qlayer_conv2d_truncate)
    y = jax.block_until_ready(fn(x, weight, bias))

    y_ref = _reference(x, weight, bias)
    assert y.shape == (N, C_OUT, H, W) and y.dtype == jnp.int32
    # allow |diff| <= 1 on the pre-mask integer (float-trunc edge), wrap-aware after masking
    d = jnp.bitwise_and(y - y_ref, (1 << OUTPUT_WIDTH) - 1)
    d = jnp.minimum(d, (1 << OUTPUT_WIDTH) - d)
    assert int(jnp.max(d)) <= 1

    print("KERNEL_OK")
</pallas_src>

<mosaic_0001>
module attributes {stable_mosaic.version = 11 : i64} {
  func.func @kernel(%arg0: i32, %arg1: memref<4x896xi32, #tpu.memory_space<vmem>>, %arg2: memref<9x8x4xf32, #tpu.memory_space<vmem>>, %arg3: memref<8x1xf32, #tpu.memory_space<vmem>>, %arg4: memref<8x768xi32, #tpu.memory_space<vmem>>) attributes {dimension_semantics = [#tpu.dimension_semantics<arbitrary>], iteration_bounds = array<i64: 1>, scalar_prefetch = 0 : i64, scratch_operands = 0 : i64, tpu.core_type = #tpu.core_type<tc>, window_params = [{pipeline_mode = #tpu.pipeline_mode<synchronous>, transform_indices = @transform_0, window_bounds = array<i64: 4, 896>}, {pipeline_mode = #tpu.pipeline_mode<synchronous>, transform_indices = @transform_1, window_bounds = array<i64: 9, 8, 4>}, {pipeline_mode = #tpu.pipeline_mode<synchronous>, transform_indices = @transform_2, window_bounds = array<i64: 8, 1>}, {pipeline_mode = #tpu.pipeline_mode<synchronous>, transform_indices = @transform_3, window_bounds = array<i64: 8, 768>}]} {
    %c0 = arith.constant 0 : index
    %c0_0 = arith.constant 0 : index
    %0 = vector.load %arg1[%c0, %c0_0] : memref<4x896xi32, #tpu.memory_space<vmem>>, vector<4x896xi32>
    %c255_i32 = arith.constant 255 : i32
    %1 = vector.broadcast %c255_i32 : i32 to vector<4x896xi32>
    %2 = arith.andi %0, %1 : vector<4x896xi32>
    %3 = arith.sitofp %2 : vector<4x896xi32> to vector<4x896xf32>
    %4 = vector.extract_strided_slice %3 {offsets = [0, 0], sizes = [4, 768], strides = [1, 1]} : vector<4x896xf32> to vector<4x768xf32>
    %c0_1 = arith.constant 0 : index
    %c0_2 = arith.constant 0 : index
    %c0_3 = arith.constant 0 : index
    %5 = vector.load %arg2[%c0_1, %c0_2, %c0_3] : memref<9x8x4xf32, #tpu.memory_space<vmem>>, vector<1x8x4xf32>
    %6 = vector.shape_cast %5 : vector<1x8x4xf32> to vector<8x4xf32>
    %cst = arith.constant dense<0.000000e+00> : vector<8x768xf32>
    %7 = tpu.matmul %6, %4, %cst {dimension_numbers = #tpu.dot_dimension_numbers<[1], [0], [0], [1], [0, 0, 1, 1], [], []>} : vector<8x4xf32>, vector<4x768xf32>, vector<8x768xf32> -> vector<8x768xf32>
    %8 = vector.extract_strided_slice %3 {offsets = [0, 1], sizes = [4, 768], strides = [1, 1]} : vector<4x896xf32> to vector<4x768xf32>
    %c1 = arith.constant 1 : index
    %c0_4 = arith.constant 0 : index
    %c0_5 = arith.constant 0 : index
    %9 = vector.load %arg2[%c1, %c0_4, %c0_5] : memref<9x8x4xf32, #tpu.memory_space<vmem>>, vector<1x8x4xf32>
    %10 = vector.shape_cast %9 : vector<1x8x4xf32> to vector<8x4xf32>
    %cst_6 = arith.constant dense<0.000000e+00> : vector<8x768xf32>
    %11 = tpu.matmul %10, %8, %cst_6 {dimension_numbers = #tpu.dot_dimension_numbers<[1], [0], [0], [1], [0, 0, 1, 1], [], []>} : vector<8x4xf32>, vector<4x768xf32>, vector<8x768xf32> -> vector<8x768xf32>
    %12 = arith.addf %7, %11 : vector<8x768xf32>
    %13 = vector.extract_strided_slice %3 {offsets = [0, 2], sizes = [4, 768], strides = [1, 1]} : vector<4x896xf32> to vector<4x768xf32>
    %c2 = arith.constant 2 : index
    %c0_7 = arith.constant 0 : index
    %c0_8 = arith.constant 0 : index
    %14 = vector.load %arg2[%c2, %c0_7, %c0_8] : memref<9x8x4xf32, #tpu.memory_space<vmem>>, vector<1x8x4xf32>
    %15 = vector.shape_cast %14 : vector<1x8x4xf32> to vector<8x4xf32>
    %cst_9 = arith.constant dense<0.000000e+00> : vector<8x768xf32>
    %16 = tpu.matmul %15, %13, %cst_9 {dimension_numbers = #tpu.dot_dimension_numbers<[1], [0], [0], [1], [0, 0, 1, 1], [], []>} : vector<8x4xf32>, vector<4x768xf32>, vector<8x768xf32> -> vector<8x768xf32>
    %17 = arith.addf %12, %16 : vector<8x768xf32>
    %18 = vector.extract_strided_slice %3 {offsets = [0, 18], sizes = [4, 768], strides = [1, 1]} : vector<4x896xf32> to vector<4x768xf32>
    %c3 = arith.constant 3 : index
    %c0_10 = arith.constant 0 : index
    %c0_11 = arith.constant 0 : index
    %19 = vector.load %arg2[%c3, %c0_10, %c0_11] : memref<9x8x4xf32, #tpu.memory_space<vmem>>, vector<1x8x4xf32>
    %20 = vector.shape_cast %19 : vector<1x8x4xf32> to vector<8x4xf32>
    %cst_12 = arith.constant dense<0.000000e+00> : vector<8x768xf32>
    %21 = tpu.matmul %20, %18, %cst_12 {dimension_numbers = #tpu.dot_dimension_numbers<[1], [0], [0], [1], [0, 0, 1, 1], [], []>} : vector<8x4xf32>, vector<4x768xf32>, vector<8x768xf32> -> vector<8x768xf32>
    %22 = arith.addf %17, %21 : vector<8x768xf32>
    %23 = vector.extract_strided_slice %3 {offsets = [0, 19], sizes = [4, 768], strides = [1, 1]} : vector<4x896xf32> to vector<4x768xf32>
    %c4 = arith.constant 4 : index
    %c0_13 = arith.constant 0 : index
    %c0_14 = arith.constant 0 : index
    %24 = vector.load %arg2[%c4, %c0_13, %c0_14] : memref<9x8x4xf32, #tpu.memory_space<vmem>>, vector<1x8x4xf32>
    %25 = vector.shape_cast %24 : vector<1x8x4xf32> to vector<8x4xf32>
    %cst_15 = arith.constant dense<0.000000e+00> : vector<8x768xf32>
    %26 = tpu.matmul %25, %23, %cst_15 {dimension_numbers = #tpu.dot_dimension_numbers<[1], [0], [0], [1], [0, 0, 1, 1], [], []>} : vector<8x4xf32>, vector<4x768xf32>, vector<8x768xf32> -> vector<8x768xf32>
    %27 = arith.addf %22, %26 : vector<8x768xf32>
    %28 = vector.extract_strided_slice %3 {offsets = [0, 20], sizes = [4, 768], strides = [1, 1]} : vector<4x896xf32> to vector<4x768xf32>
    %c5 = arith.constant 5 : index
    %c0_16 = arith.constant 0 : index
    %c0_17 = arith.constant 0 : index
    %29 = vector.load %arg2[%c5, %c0_16, %c0_17] : memref<9x8x4xf32, #tpu.memory_space<vmem>>, vector<1x8x4xf32>
    %30 = vector.shape_cast %29 : vector<1x8x4xf32> to vector<8x4xf32>
    %cst_18 = arith.constant dense<0.000000e+00> : vector<8x768xf32>
    %31 = tpu.matmul %30, %28, %cst_18 {dimension_numbers = #tpu.dot_dimension_numbers<[1], [0], [0], [1], [0, 0, 1, 1], [], []>} : vector<8x4xf32>, vector<4x768xf32>, vector<8x768xf32> -> vector<8x768xf32>
    %32 = arith.addf %27, %31 : vector<8x768xf32>
    %33 = vector.extract_strided_slice %3 {offsets = [0, 36], sizes = [4, 768], strides = [1, 1]} : vector<4x896xf32> to vector<4x768xf32>
    %c6 = arith.constant 6 : index
    %c0_19 = arith.constant 0 : index
    %c0_20 = arith.constant 0 : index
    %34 = vector.load %arg2[%c6, %c0_19, %c0_20] : memref<9x8x4xf32, #tpu.memory_space<vmem>>, vector<1x8x4xf32>
    %35 = vector.shape_cast %34 : vector<1x8x4xf32> to vector<8x4xf32>
    %cst_21 = arith.constant dense<0.000000e+00> : vector<8x768xf32>
    %36 = tpu.matmul %35, %33, %cst_21 {dimension_numbers = #tpu.dot_dimension_numbers<[1], [0], [0], [1], [0, 0, 1, 1], [], []>} : vector<8x4xf32>, vector<4x768xf32>, vector<8x768xf32> -> vector<8x768xf32>
    %37 = arith.addf %32, %36 : vector<8x768xf32>
    %38 = vector.extract_strided_slice %3 {offsets = [0, 37], sizes = [4, 768], strides = [1, 1]} : vector<4x896xf32> to vector<4x768xf32>
    %c7 = arith.constant 7 : index
    %c0_22 = arith.constant 0 : index
    %c0_23 = arith.constant 0 : index
    %39 = vector.load %arg2[%c7, %c0_22, %c0_23] : memref<9x8x4xf32, #tpu.memory_space<vmem>>, vector<1x8x4xf32>
    %40 = vector.shape_cast %39 : vector<1x8x4xf32> to vector<8x4xf32>
    %cst_24 = arith.constant dense<0.000000e+00> : vector<8x768xf32>
    %41 = tpu.matmul %40, %38, %cst_24 {dimension_numbers = #tpu.dot_dimension_numbers<[1], [0], [0], [1], [0, 0, 1, 1], [], []>} : vector<8x4xf32>, vector<4x768xf32>, vector<8x768xf32> -> vector<8x768xf32>
    %42 = arith.addf %37, %41 : vector<8x768xf32>
    %43 = vector.extract_strided_slice %3 {offsets = [0, 38], sizes = [4, 768], strides = [1, 1]} : vector<4x896xf32> to vector<4x768xf32>
    %c8 = arith.constant 8 : index
    %c0_25 = arith.constant 0 : index
    %c0_26 = arith.constant 0 : index
    %44 = vector.load %arg2[%c8, %c0_25, %c0_26] : memref<9x8x4xf32, #tpu.memory_space<vmem>>, vector<1x8x4xf32>
    %45 = vector.shape_cast %44 : vector<1x8x4xf32> to vector<8x4xf32>
    %cst_27 = arith.constant dense<0.000000e+00> : vector<8x768xf32>
    %46 = tpu.matmul %45, %43, %cst_27 {dimension_numbers = #tpu.dot_dimension_numbers<[1], [0], [0], [1], [0, 0, 1, 1], [], []>} : vector<8x4xf32>, vector<4x768xf32>, vector<8x768xf32> -> vector<8x768xf32>
    %47 = arith.addf %42, %46 : vector<8x768xf32>
    %c0_28 = arith.constant 0 : index
    %c0_29 = arith.constant 0 : index
    %48 = vector.load %arg3[%c0_28, %c0_29] : memref<8x1xf32, #tpu.memory_space<vmem>>, vector<8x1xf32>
    %49 = vector.broadcast %48 : vector<8x1xf32> to vector<8x768xf32>
    %50 = arith.addf %47, %49 : vector<8x768xf32>
    %51 = arith.fptosi %50 : vector<8x768xf32> to vector<8x768xi32>
    %c255_i32_30 = arith.constant 255 : i32
    %52 = vector.broadcast %c255_i32_30 : i32 to vector<8x768xi32>
    %53 = arith.andi %51, %52 : vector<8x768xi32>
    %c0_31 = arith.constant 0 : index
    %c0_32 = arith.constant 0 : index
    %54 = vector.load %arg4[%c0_31, %c0_32] : memref<8x768xi32, #tpu.memory_space<vmem>>, vector<8x768xi32>
    tpu.vector_store %arg4[%c0_31, %c0_32], %53 {strides = array<i32>} : memref<8x768xi32, #tpu.memory_space<vmem>>, vector<8x768xi32>,
    return
  }
  func.func @transform_0(%arg0: i32) -> (i32, i32) {
    %c0_i32 = arith.constant 0 : i32
    %c0_i32_0 = arith.constant 0 : i32
    %c0_i32_1 = arith.constant 0 : i32
    return %c0_i32, %c0_i32_0 : i32, i32
  }
  func.func @transform_1(%arg0: i32) -> (i32, i32, i32) {
    %c0_i32 = arith.constant 0 : i32
    %c0_i32_0 = arith.constant 0 : i32
    %c0_i32_1 = arith.constant 0 : i32
    %c0_i32_2 = arith.constant 0 : i32
    return %c0_i32, %c0_i32_0, %c0_i32_1 : i32, i32, i32
  }
  func.func @transform_2(%arg0: i32) -> (i32, i32) {
    %c0_i32 = arith.constant 0 : i32
    %c0_i32_0 = arith.constant 0 : i32
    %c0_i32_1 = arith.constant 0 : i32
    return %c0_i32, %c0_i32_0 : i32, i32
  }
  func.func @transform_3(%arg0: i32) -> (i32, i32) {
    %c0_i32 = arith.constant 0 : i32
    %c0_i32_0 = arith.constant 0 : i32
    %c0_i32_1 = arith.constant 0 : i32
    return %c0_i32, %c0_i32_0 : i32, i32
  }
}

</mosaic_0001>

<llo_original>
// kernel: qlayer_conv2d_truncate.1
$region0: #{qlayer_conv2d_truncate.1}
  #allocation0 [shape = 'u32[]', space=smem, size = 0x4, offset = 0x4, fixed_abs, tag = 'smem constant byte address 0x4 - core index']
  #allocation1 [shape = 'u32[144,128]{1,0:T(1,128)}', space=vmem, size = 0x12000, scoped, tag = 'internal scratch']
  %s0 = inlined_call_operand.vmem [shape: s32[4,896], index: 0, kind: input, shape index: {}]
  %s1 = inlined_call_operand.vmem [shape: f32[9,8,4], index: 1, kind: input, shape index: {}]
  %s2 = inlined_call_operand.vmem [shape: f32[8,1], index: 2, kind: input, shape index: {}]
  %s3 = inlined_call_operand.vmem [shape: s32[8,768], index: 3, kind: output, shape index: {}]
  %s4 = sld [smem:[#allocation0]]
  $region22: #{qlayer_conv2d_truncate.1} parent=0
    _
  %s6 = ssub.s32 1, %s4
  %s7 = scalar_select 0, %s6, %s4
  // Predicated region
  $region2: #{qlayer_conv2d_truncate.1} parent=0 // pred_check
    _
  $region3: #{qlayer_conv2d_truncate.1} parent=0 // pred_check_branch
    %9 = sbr.rel (0) target = $region5
  $region4: #{qlayer_conv2d_truncate.1} parent=0 // pred_region
    _
  $region5: #{qlayer_conv2d_truncate.1} parent=0 // pred_fallthru
    _
  // Predicated region
  $region6: #{qlayer_conv2d_truncate.1} parent=0 // pred_check
    _
  $region7: #{qlayer_conv2d_truncate.1} parent=0 // pred_check_branch
    %11 = sbr.rel (0) target = $region9
  $region8: #{qlayer_conv2d_truncate.1} parent=0 // pred_region
    _
  $region9: #{qlayer_conv2d_truncate.1} parent=0 // pred_fallthru
    _
  // Predicated region
  $region10: #{qlayer_conv2d_truncate.1} parent=0 // pred_check
    _
  $region11: #{qlayer_conv2d_truncate.1} parent=0 // pred_check_branch
    %13 = sbr.rel (0) target = $region13
  $region12: #{qlayer_conv2d_truncate.1} parent=0 // pred_region
    _
  $region13: #{qlayer_conv2d_truncate.1} parent=0 // pred_fallthru
    _
  %v14 = vld [vmem:[%s0] sm:$0xff]
  %v15 = vld [vmem:[%s0 + $0x8] sm:$0xff]
  %v16 = vld [vmem:[%s0 + $0x10] sm:$0xff]
  %v17 = vld [vmem:[%s0 + $0x18] sm:$0xf]
  %v18 = vand.u32 %v14, 255
  %v19 = vand.u32 %v15, 255
  %v20 = vand.u32 %v16, 255
  %v21 = vand.u32 %v17, 255
  %v22 = vcvt.s32.f32 %v18
  %v23 = vcvt.s32.f32 %v19
  %v24 = vcvt.s32.f32 %v20
  %v25 = vcvt.s32.f32 %v21
  %v26 = vld [vmem:[%s1] sm:$0xff]
  %s27 = scalar_lea.vmem %s1, 8
  %v28 = vld [vmem:[%s27] sm:$0xff]
  %v33 = vcombine.high %v22, %v22
  %v34 = vcombine.high %v23, %v23
  %v35 = vcombine.high %v24, %v24
  %36 = vrot.lane.b32.xlu0 %v22, 127
  %v37 = vpop.permute.xlu0 %36
  %38 = vrot.lane.b32.xlu0 %v33, 127
  %v39 = vpop.permute.xlu0 %38
  %40 = vrot.lane.b32.xlu0 %v23, 127
  %v41 = vpop.permute.xlu0 %40
  %42 = vrot.lane.b32.xlu0 %v34, 127
  %v43 = vpop.permute.xlu0 %42
  %44 = vrot.lane.b32.xlu0 %v24, 127
  %v45 = vpop.permute.xlu0 %44
  %46 = vrot.lane.b32.xlu0 %v35, 127
  %v47 = vpop.permute.xlu0 %46
  %48 = vrot.lane.b32.xlu0 %v25, 127
  %v49 = vpop.permute.xlu0 %48
  %vm50 = vcmask 1039360
  %v51 = vsel %vm50, %v37, %v39
  %v52 = vsel %vm50, %v39, %v41
  %v53 = vsel %vm50, %v41, %v43
  %v54 = vsel %vm50, %v43, %v45
  %v55 = vsel %vm50, %v45, %v47
  %v56 = vsel %vm50, %v47, %v49
  %vm57 = vcmask 31744
  %v59 = vsel %vm57, %v28, 0
  %vm61 = vcmask 1043456
  %v62 = vsel %vm61, %v51, 0
  %v64 = vsel %vm61, %v52, 0
  %v66 = vsel %vm61, %v53, 0
  %v68 = vsel %vm61, %v54, 0
  %v70 = vsel %vm61, %v55, 0
  %v72 = vsel %vm61, %v56, 0
  %74 = vmatprep.subr.mxu0 %v64
  %75 = vmatpush1.msra.mxu0 %v62
  %76 = vmatprep.subr.mxu0 0.0
  %77 = vmatpush1.msra.mxu0 0.0
  %78 = vmatprep.subr.mxu0 0.0
  %79 = vmatpush1.msra.mxu0 0.0
  %80 = vmatprep.subr.mxu0 0.0
  %81 = vmatpush1.msra.mxu0 0.0
  %82 = vmatprep.subr.mxu0 0.0
  %83 = vmatpush1.msra.mxu0 0.0
  %84 = vmatprep.subr.mxu0 0.0
  %85 = vmatpush1.msra.mxu0 0.0
  %86 = vmatprep.subr.mxu0 0.0
  %87 = vmatpush1.msra.mxu0 0.0
  %88 = vmatprep.subr.mxu0 0.0
  %89 = vmatpush1.msra.mxu0 0.0
  %90 = vmatprep.subr.mxu0 0.0
  %91 = vmatpush1.msra.mxu0 0.0
  %92 = vmatprep.subr.mxu0 0.0
  %93 = vmatpush1.msra.mxu0 0.0
  %94 = vmatprep.subr.mxu0 0.0
  %95 = vmatpush1.msra.mxu0 0.0
  %96 = vmatprep.subr.mxu0 0.0
  %97 = vmatpush1.msra.mxu0 0.0
  %98 = vmatprep.subr.mxu0 0.0
  %99 = vmatpush1.msra.mxu0 0.0
  %100 = vmatprep.subr.mxu0 0.0
  %101 = vmatpush1.msra.mxu0 0.0
  %102 = vmatprep.subr.mxu0 0.0
  %103 = vmatpush1.msra.mxu0 0.0
  %104 = vmatprep.subr.mxu0 0.0
  %105 = vmatpush1.msra.mxu0 0.0
  %106 = vmatprep.subr.mxu0 0.0
  %107 = vmatpush1.msra.mxu0 0.0
  %108 = vmatprep.subr.mxu0 0.0
  %109 = vmatpush1.msra.mxu0 0.0
  %110 = vmatprep.subr.mxu0 0.0
  %111 = vmatpush1.msra.mxu0 0.0
  %112 = vmatprep.subr.mxu0 0.0
  %113 = vmatpush1.msra.mxu0 0.0
  %114 = vmatprep.subr.mxu0 0.0
  %115 = vmatpush1.msra.mxu0 0.0
  %116 = vmatprep.subr.mxu0 0.0
  %117 = vmatpush1.msra.mxu0 0.0
  %118 = vmatprep.subr.mxu0 0.0
  %119 = vmatpush1.msra.mxu0 0.0
  %120 = vmatprep.subr.mxu0 0.0
  %121 = vmatpush1.msra.mxu0 0.0
  %122 = vmatprep.subr.mxu0 0.0
  %123 = vmatpush1.msra.mxu0 0.0
  %124 = vmatprep.subr.mxu0 0.0
  %125 = vmatpush1.msra.mxu0 0.0
  %126 = vmatprep.subr.mxu0 0.0
  %127 = vmatpush1.msra.mxu0 0.0
  %128 = vmatprep.subr.mxu0 0.0
  %129 = vmatpush1.msra.mxu0 0.0
  %130 = vmatprep.subr.mxu0 0.0
  %131 = vmatpush1.msra.mxu0 0.0
  %132 = vmatprep.subr.mxu0 0.0
  %133 = vmatpush1.msra.mxu0 0.0
  %134 = vmatprep.subr.mxu0 0.0
  %135 = vmatpush1.msra.mxu0 0.0
  %136 = vmatprep.subr.mxu0 0.0
  %137 = vmatpush1.msra.mxu0 0.0
  %138 = vmatprep.mubr.f32.mxu0 0.0
  %139 = vmatmul.mubr.f32.gmra.mrb[0].mxu0 %v59
  %v140 = vpop.f32.mrb[0].mxu0
  %v141 = vadd.f32 0.0, %v140
  %v142 = vpop.f32.mrb[0].mxu0
  %v143 = vadd.f32 0.0, %v142
  %144 = vdwg.mxu0
  %145 = vmatprep.subr.mxu0 %v68
  %146 = vmatpush1.msra.mxu0 %v66
  %147 = vmatprep.subr.mxu0 0.0
  %148 = vmatpush1.msra.mxu0 0.0
  %149 = vmatprep.subr.mxu0 0.0
  %150 = vmatpush1.msra.mxu0 0.0
  %151 = vmatprep.subr.mxu0 0.0
  %152 = vmatpush1.msra.mxu0 0.0
  %153 = vmatprep.subr.mxu0 0.0
  %154 = vmatpush1.msra.mxu0 0.0
  %155 = vmatprep.subr.mxu0 0.0
  %156 = vmatpush1.msra.mxu0 0.0
  %157 = vmatprep.subr.mxu0 0.0
  %158 = vmatpush1.msra.mxu0 0.0
  %159 = vmatprep.subr.mxu0 0.0
  %160 = vmatpush1.msra.mxu0 0.0
  %161 = vmatprep.subr.mxu0 0.0
  %162 = vmatpush1.msra.mxu0 0.0
  %163 = vmatprep.subr.mxu0 0.0
  %164 = vmatpush1.msra.mxu0 0.0
  %165 = vmatprep.subr.mxu0 0.0
  %166 = vmatpush1.msra.mxu0 0.0
  %167 = vmatprep.subr.mxu0 0.0
  %168 = vmatpush1.msra.mxu0 0.0
  %169 = vmatprep.subr.mxu0 0.0
  %170 = vmatpush1.msra.mxu0 0.0
  %171 = vmatprep.subr.mxu0 0.0
  %172 = vmatpush1.msra.mxu0 0.0
  %173 = vmatprep.subr.mxu0 0.0
  %174 = vmatpush1.msra.mxu0 0.0
  %175 = vmatprep.subr.mxu0 0.0
  %176 = vmatpush1.msra.mxu0 0.0
  %177 = vmatprep.subr.mxu0 0.0
  %178 = vmatpush1.msra.mxu0 0.0
  %179 = vmatprep.subr.mxu0 0.0
  %180 = vmatpush1.msra.mxu0 0.0
  %181 = vmatprep.subr.mxu0 0.0
  %182 = vmatpush1.msra.mxu0 0.0
  %183 = vmatprep.subr.mxu0 0.0
  %184 = vmatpush1.msra.mxu0 0.0
  %185 = vmatprep.subr.mxu0 0.0
  %186 = vmatpush1.msra.mxu0 0.0
  %187 = vmatprep.subr.mxu0 0.0
  %188 = vmatpush1.msra.mxu0 0.0
  %189 = vmatprep.subr.mxu0 0.0
  %190 = vmatpush1.msra.mxu0 0.0
  %191 = vmatprep.subr.mxu0 0.0
  %192 = vmatpush1.msra.mxu0 0.0
  %193 = vmatprep.subr.mxu0 0.0
  %194 = vmatpush1.msra.mxu0 0.0
  %195 = vmatprep.subr.mxu0 0.0
  %196 = vmatpush1.msra.mxu0 0.0
  %197 = vmatprep.subr.mxu0 0.0
  %198 = vmatpush1.msra.mxu0 0.0
  %199 = vmatprep.subr.mxu0 0.0
  %200 = vmatpush1.msra.mxu0 0.0
  %201 = vmatprep.subr.mxu0 0.0
  %202 = vmatpush1.msra.mxu0 0.0
  %203 = vmatprep.subr.mxu0 0.0
  %204 = vmatpush1.msra.mxu0 0.0
  %205 = vmatprep.subr.mxu0 0.0
  %206 = vmatpush1.msra.mxu0 0.0
  %207 = vmatprep.subr.mxu0 0.0
  %208 = vmatpush1.msra.mxu0 0.0
  %209 = vmatprep.mubr.f32.mxu0 0.0
  %210 = vmatmul.mubr.f32.gmra.mrb[0].mxu0 %v59
  %v211 = vpop.f32.mrb[0].mxu0
  %v212 = vadd.f32 0.0, %v211
  %v213 = vpop.f32.mrb[0].mxu0
  %v214 = vadd.f32 0.0, %v213
  %215 = vdwg.mxu0
  %216 = vmatprep.subr.mxu0 %v72
  %217 = vmatpush1.msra.mxu0 %v70
  %218 = vmatprep.subr.mxu0 0.0
  %219 = vmatpush1.msra.mxu0 0.0
  %220 = vmatprep.subr.mxu0 0.0
  %221 = vmatpush1.msra.mxu0 0.0
  %222 = vmatprep.subr.mxu0 0.0
  %223 = vmatpush1.msra.mxu0 0.0
  %224 = vmatprep.subr.mxu0 0.0
  %225 = vmatpush1.msra.mxu0 0.0
  %226 = vmatprep.subr.mxu0 0.0
  %227 = vmatpush1.msra.mxu0 0.0
  %228 = vmatprep.subr.mxu0 0.0
  %229 = vmatpush1.msra.mxu0 0.0
  %230 = vmatprep.subr.mxu0 0.0
  %231 = vmatpush1.msra.mxu0 0.0
  %232 = vmatprep.subr.mxu0 0.0
  %233 = vmatpush1.msra.mxu0 0.0
  %234 = vmatprep.subr.mxu0 0.0
  %235 = vmatpush1.msra.mxu0 0.0
  %236 = vmatprep.subr.mxu0 0.0
  %237 = vmatpush1.msra.mxu0 0.0
  %238 = vmatprep.subr.mxu0 0.0
  %239 = vmatpush1.msra.mxu0 0.0
  %240 = vmatprep.subr.mxu0 0.0
  %241 = vmatpush1.msra.mxu0 0.0
  %242 = vmatprep.subr.mxu0 0.0
  %243 = vmatpush1.msra.mxu0 0.0
  %244 = vmatprep.subr.mxu0 0.0
  %245 = vmatpush1.msra.mxu0 0.0
  %246 = vmatprep.subr.mxu0 0.0
  %247 = vmatpush1.msra.mxu0 0.0
  %248 = vmatprep.subr.mxu0 0.0
  %249 = vmatpush1.msra.mxu0 0.0
  %250 = vmatprep.subr.mxu0 0.0
  %251 = vmatpush1.msra.mxu0 0.0
  %252 = vmatprep.subr.mxu0 0.0
  %253 = vmatpush1.msra.mxu0 0.0
  %254 = vmatprep.subr.mxu0 0.0
  %255 = vmatpush1.msra.mxu0 0.0
  %256 = vmatprep.subr.mxu0 0.0
  %257 = vmatpush1.msra.mxu0 0.0
  %258 = vmatprep.subr.mxu0 0.0
  %259 = vmatpush1.msra.mxu0 0.0
  %260 = vmatprep.subr.mxu0 0.0
  %261 = vmatpush1.msra.mxu0 0.0
  %262 = vmatprep.subr.mxu0 0.0
  %263 = vmatpush1.msra.mxu0 0.0
  %264 = vmatprep.subr.mxu0 0.0
  %265 = vmatpush1.msra.mxu0 0.0
  %266 = vmatprep.subr.mxu0 0.0
  %267 = vmatpush1.msra.mxu0 0.0
  %268 = vmatprep.subr.mxu0 0.0
  %269 = vmatpush1.msra.mxu0 0.0
  %270 = vmatprep.subr.mxu0 0.0
  %271 = vmatpush1.msra.mxu0 0.0
  %272 = vmatprep.subr.mxu0 0.0
  %273 = vmatpush1.msra.mxu0 0.0
  %274 = vmatprep.subr.mxu0 0.0
  %275 = vmatpush1.msra.mxu0 0.0
  %276 = vmatprep.subr.mxu0 0.0
  %277 = vmatpush1.msra.mxu0 0.0
  %278 = vmatprep.subr.mxu0 0.0
  %279 = vmatpush1.msra.mxu0 0.0
  %280 = vmatprep.mubr.f32.mxu0 0.0
  %281 = vmatmul.mubr.f32.gmra.mrb[0].mxu0 %v59
  %v282 = vpop.f32.mrb[0].mxu0
  %v283 = vadd.f32 0.0, %v282
  %v284 = vpop.f32.mrb[0].mxu0
  %v285 = vadd.f32 0.0, %v284
  %286 = vdwg.mxu0
  %v288 = vsel %vm57, %v26, 0
  %v290 = vsel %vm61, %v22, 0
  %v292 = vsel %vm61, %v33, 0
  %v294 = vsel %vm61, %v23, 0
  %v296 = vsel %vm61, %v34, 0
  %v298 = vsel %vm61, %v24, 0
  %v300 = vsel %vm61, %v35, 0
  %302 = vmatprep.subr.mxu0 %v292
  %303 = vmatpush1.msra.mxu0 %v290
  %304 = vmatprep.subr.mxu0 0.0
  %305 = vmatpush1.msra.mxu0 0.0
  %306 = vmatprep.subr.mxu0 0.0
  %307 = vmatpush1.msra.mxu0 0.0
  %308 = vmatprep.subr.mxu0 0.0
  %309 = vmatpush1.msra.mxu0 0.0
  %310 = vmatprep.subr.mxu0 0.0
  %311 = vmatpush1.msra.mxu0 0.0
  %312 = vmatprep.subr.mxu0 0.0
  %313 = vmatpush1.msra.mxu0 0.0
  %314 = vmatprep.subr.mxu0 0.0
  %315 = vmatpush1.msra.mxu0 0.0
  %316 = vmatprep.subr.mxu0 0.0
  %317 = vmatpush1.msra.mxu0 0.0
  %318 = vmatprep.subr.mxu0 0.0
  %319 = vmatpush1.msra.mxu0 0.0
  %320 = vmatprep.subr.mxu0 0.0
  %321 = vmatpush1.msra.mxu0 0.0
  %322 = vmatprep.subr.mxu0 0.0
  %323 = vmatpush1.msra.mxu0 0.0
  %324 = vmatprep.subr.mxu0 0.0
  %325 = vmatpush1.msra.mxu0 0.0
  %326 = vmatprep.subr.mxu0 0.0
  %327 = vmatpush1.msra.mxu0 0.0
  %328 = vmatprep.subr.mxu0 0.0
  %329 = vmatpush1.msra.mxu0 0.0
  %330 = vmatprep.subr.mxu0 0.0
  %331 = vmatpush1.msra.mxu0 0.0
  %332 = vmatprep.subr.mxu0 0.0
  %333 = vmatpush1.msra.mxu0 0.0
  %334 = vmatprep.subr.mxu0 0.0
  %335 = vmatpush1.msra.mxu0 0.0
  %336 = vmatprep.subr.mxu0 0.0
  %337 = vmatpush1.msra.mxu0 0.0
  %338 = vmatprep.subr.mxu0 0.0
  %339 = vmatpush1.msra.mxu0 0.0
  %340 = vmatprep.subr.mxu0 0.0
  %341 = vmatpush1.msra.mxu0 0.0
  %342 = vmatprep.subr.mxu0 0.0
  %343 = vmatpush1.msra.mxu0 0.0
  %344 = vmatprep.subr.mxu0 0.0
  %345 = vmatpush1.msra.mxu0 0.0
  %346 = vmatprep.subr.mxu0 0.0
  %347 = vmatpush1.msra.mxu0 0.0
  %348 = vmatprep.subr.mxu0 0.0
  %349 = vmatpush1.msra.mxu0 0.0
  %350 = vmatprep.subr.mxu0 0.0
  %351 = vmatpush1.msra.mxu0 0.0
  %352 = vmatprep.subr.mxu0 0.0
  %353 = vmatpush1.msra.mxu0 0.0
  %354 = vmatprep.subr.mxu0 0.0
  %355 = vmatpush1.msra.mxu0 0.0
  %356 = vmatprep.subr.mxu0 0.0
  %357 = vmatpush1.msra.mxu0 0.0
  %358 = vmatprep.subr.mxu0 0.0
  %359 = vmatpush1.msra.mxu0 0.0
  %360 = vmatprep.subr.mxu0 0.0
  %361 = vmatpush1.msra.mxu0 0.0
  %362 = vmatprep.subr.mxu0 0.0
  %363 = vmatpush1.msra.mxu0 0.0
  %364 = vmatprep.subr.mxu0 0.0
  %365 = vmatpush1.msra.mxu0 0.0
  %366 = vmatprep.mubr.f32.mxu0 0.0
  %367 = vmatmul.mubr.f32.gmra.mrb[0].mxu0 %v288
  %v368 = vpop.f32.mrb[0].mxu0
  %v369 = vadd.f32 %v141, %v368
  %v370 = vpop.f32.mrb[0].mxu0
  %v371 = vadd.f32 %v143, %v370
  %372 = vdwg.mxu0
  %373 = vmatprep.subr.mxu0 %v296
  %374 = vmatpush1.msra.mxu0 %v294
  %375 = vmatprep.subr.mxu0 0.0
  %376 = vmatpush1.msra.mxu0 0.0
  %377 = vmatprep.subr.mxu0 0.0
  %378 = vmatpush1.msra.mxu0 0.0
  %379 = vmatprep.subr.mxu0 0.0
  %380 = vmatpush1.msra.mxu0 0.0
  %381 = vmatprep.subr.mxu0 0.0
  %382 = vmatpush1.msra.mxu0 0.0
  %383 = vmatprep.subr.mxu0 0.0
  %384 = vmatpush1.msra.mxu0 0.0
  %385 = vmatprep.subr.mxu0 0.0
  %386 = vmatpush1.msra.mxu0 0.0
  %387 = vmatprep.subr.mxu0 0.0
  %388 = vmatpush1.msra.mxu0 0.0
  %389 = vmatprep.subr.mxu0 0.0
  %390 = vmatpush1.msra.mxu0 0.0
  %391 = vmatprep.subr.mxu0 0.0
  %392 = vmatpush1.msra.mxu0 0.0
  %393 = vmatprep.subr.mxu0 0.0
  %394 = vmatpush1.msra.mxu0 0.0
  %395 = vmatprep.subr.mxu0 0.0
  %396 = vmatpush1.msra.mxu0 0.0
  %397 = vmatprep.subr.mxu0 0.0
  %398 = vmatpush1.msra.mxu0 0.0
  %399 = vmatprep.subr.mxu0 0.0
  %400 = vmatpush1.msra.mxu0 0.0
  %401 = vmatprep.subr.mxu0 0.0
  %402 = vmatpush1.msra.mxu0 0.0
  %403 = vmatprep.subr.mxu0 0.0
  %404 = vmatpush1.msra.mxu0 0.0
  %405 = vmatprep.subr.mxu0 0.0
  %406 = vmatpush1.msra.mxu0 0.0
  %407 = vmatprep.subr.mxu0 0.0
  %408 = vmatpush1.msra.mxu0 0.0
  %409 = vmatprep.subr.mxu0 0.0
  %410 = vmatpush1.msra.mxu0 0.0
  %411 = vmatprep.subr.mxu0 0.0
  %412 = vmatpush1.msra.mxu0 0.0
  %413 = vmatprep.subr.mxu0 0.0
  %414 = vmatpush1.msra.mxu0 0.0
  %415 = vmatprep.subr.mxu0 0.0
  %416 = vmatpush1.msra.mxu0 0.0
  %417 = vmatprep.subr.mxu0 0.0
  %418 = vmatpush1.msra.mxu0 0.0
  %419 = vmatprep.subr.mxu0 0.0
  %420 = vmatpush1.msra.mxu0 0.0
  %421 = vmatprep.subr.mxu0 0.0
  %422 = vmatpush1.msra.mxu0 0.0
  %423 = vmatprep.subr.mxu0 0.0
  %424 = vmatpush1.msra.mxu0 0.0
  %425 = vmatprep.subr.mxu0 0.0
  %426 = vmatpush1.msra.mxu0 0.0
  %427 = vmatprep.subr.mxu0 0.0
  %428 = vmatpush1.msra.mxu0 0.0
  %429 = vmatprep.subr.mxu0 0.0
  %430 = vmatpush1.msra.mxu0 0.0
  %431 = vmatprep.subr.mxu0 0.0
  %432 = vmatpush1.msra.mxu0 0.0
  %433 = vmatprep.subr.mxu0 0.0
  %434 = vmatpush1.msra.mxu0 0.0
  %435 = vmatprep.subr.mxu0 0.0
  %436 = vmatpush1.msra.mxu0 0.0
  %437 = vmatprep.mubr.f32.mxu0 0.0
  %438 = vmatmul.mubr.f32.gmra.mrb[0].mxu0 %v288
  %v439 = vpop.f32.mrb[0].mxu0
  %v440 = vadd.f32 %v212, %v439
  %v441 = vpop.f32.mrb[0].mxu0
  %v442 = vadd.f32 %v214, %v441
  %443 = vdwg.mxu0
  %444 = vmatprep.subr.mxu0 %v300
  %445 = vmatpush1.msra.mxu0 %v298
  %446 = vmatprep.subr.mxu0 0.0
  %447 = vmatpush1.msra.mxu0 0.0
  %448 = vmatprep.subr.mxu0 0.0
  %449 = vmatpush1.msra.mxu0 0.0
  %450 = vmatprep.subr.mxu0 0.0
  %451 = vmatpush1.msra.mxu0 0.0
  %452 = vmatprep.subr.mxu0 0.0
  %453 = vmatpush1.msra.mxu0 0.0
  %454 = vmatprep.subr.mxu0 0.0
  %455 = vmatpush1.msra.mxu0 0.0
  %456 = vmatprep.subr.mxu0 0.0
  %457 = vmatpush1.msra.mxu0 0.0
  %458 = vmatprep.subr.mxu0 0.0
  %459 = vmatpush1.msra.mxu0 0.0
  %460 = vmatprep.subr.mxu0 0.0
  %461 = vmatpush1.msra.mxu0 0.0
  %462 = vmatprep.subr.mxu0 0.0
  %463 = vmatpush1.msra.mxu0 0.0
  %464 = vmatprep.subr.mxu0 0.0
  %465 = vmatpush1.msra.mxu0 0.0
  %466 = vmatprep.subr.mxu0 0.0
  %467 = vmatpush1.msra.mxu0 0.0
  %468 = vmatprep.subr.mxu0 0.0
  %469 = vmatpush1.msra.mxu0 0.0
  %470 = vmatprep.subr.mxu0 0.0
  %471 = vmatpush1.msra.mxu0 0.0
  %472 = vmatprep.subr.mxu0 0.0
  %473 = vmatpush1.msra.mxu0 0.0
  %474 = vmatprep.subr.mxu0 0.0
  %475 = vmatpush1.msra.mxu0 0.0
  %476 = vmatprep.subr.mxu0 0.0
  %477 = vmatpush1.msra.mxu0 0.0
  %478 = vmatprep.subr.mxu0 0.0
  %479 = vmatpush1.msra.mxu0 0.0
  %480 = vmatprep.subr.mxu0 0.0
  %481 = vmatpush1.msra.mxu0 0.0
  %482 = vmatprep.subr.mxu0 0.0
  %483 = vmatpush1.msra.mxu0 0.0
  %484 = vmatprep.subr.mxu0 0.0
  %485 = vmatpush1.msra.mxu0 0.0
  %486 = vmatprep.subr.mxu0 0.0
  %487 = vmatpush1.msra.mxu0 0.0
  %488 = vmatprep.subr.mxu0 0.0
  %489 = vmatpush1.msra.mxu0 0.0
  %490 = vmatprep.subr.mxu0 0.0
  %491 = vmatpush1.msra.mxu0 0.0
  %492 = vmatprep.subr.mxu0 0.0
  %493 = vmatpush1.msra.mxu0 0.0
  %494 = vmatprep.subr.mxu0 0.0
  %495 = vmatpush1.msra.mxu0 0.0
  %496 = vmatprep.subr.mxu0 0.0
  %497 = vmatpush1.msra.mxu0 0.0
  %498 = vmatprep.subr.mxu0 0.0
  %499 = vmatpush1.msra.mxu0 0.0
  %500 = vmatprep.subr.mxu0 0.0
  %501 = vmatpush1.msra.mxu0 0.0
  %502 = vmatprep.subr.mxu0 0.0
  %503 = vmatpush1.msra.mxu0 0.0
  %504 = vmatprep.subr.mxu0 0.0
  %505 = vmatpush1.msra.mxu0 0.0
  %506 = vmatprep.subr.mxu0 0.0
  %507 = vmatpush1.msra.mxu0 0.0
  %508 = vmatprep.mubr.f32.mxu0 0.0
  %509 = vmatmul.mubr.f32.gmra.mrb[0].mxu0 %v288
  %v510 = vpop.f32.mrb[0].mxu0
  %v511 = vadd.f32 %v283, %v510
  %v512 = vpop.f32.mrb[0].mxu0
  %v513 = vadd.f32 %v285, %v512
  %514 = vdwg.mxu0
  %s515 = scalar_lea.vmem %s1, 16
  %v516 = vld [vmem:[%s515] sm:$0xff]
  %517 = vrot.lane.b32.xlu0 %v22, 126
  %v518 = vpop.permute.xlu0 %517
  %519 = vrot.lane.b32.xlu0 %v33, 126
  %v520 = vpop.permute.xlu0 %519
  %521 = vrot.lane.b32.xlu0 %v23, 126
  %v522 = vpop.permute.xlu0 %521
  %523 = vrot.lane.b32.xlu0 %v34, 126
  %v524 = vpop.permute.xlu0 %523
  %525 = vrot.lane.b32.xlu0 %v24, 126
  %v526 = vpop.permute.xlu0 %525
  %527 = vrot.lane.b32.xlu0 %v35, 126
  %v528 = vpop.permute.xlu0 %527
  %529 = vrot.lane.b32.xlu0 %v25, 126
  %v530 = vpop.permute.xlu0 %529
  %vm531 = vcmask 1031168
  %v532 = vsel %vm531, %v518, %v520
  %v533 = vsel %vm531, %v520, %v522
  %v534 = vsel %vm531, %v522, %v524
  %v535 = vsel %vm531, %v524, %v526
  %v536 = vsel %vm531, %v526, %v528
  %v537 = vsel %vm531, %v528, %v530
  %v539 = vsel %vm57, %v516, 0
  %v541 = vsel %vm61, %v532, 0
  %v543 = vsel %vm61, %v533, 0
  %v545 = vsel %vm61, %v534, 0
  %v547 = vsel %vm61, %v535, 0
  %v549 = vsel %vm61, %v536, 0
  %v551 = vsel %vm61, %v537, 0
  %553 = vmatprep.subr.mxu0 %v543
  %554 = vmatpush1.msra.mxu0 %v541
  %555 = vmatprep.subr.mxu0 0.0
  %556 = vmatpush1.msra.mxu0 0.0
  %557 = vmatprep.subr.mxu0 0.0
  %558 = vmatpush1.msra.mxu0 0.0
  %559 = vmatprep.subr.mxu0 0.0
  %560 = vmatpush1.msra.mxu0 0.0
  %561 = vmatprep.subr.mxu0 0.0
  %562 = vmatpush1.msra.mxu0 0.0
  %563 = vmatprep.subr.mxu0 0.0
  %564 = vmatpush1.msra.mxu0 0.0
  %565 = vmatprep.subr.mxu0 0.0
  %566 = vmatpush1.msra.mxu0 0.0
  %567 = vmatprep.subr.mxu0 0.0
  %568 = vmatpush1.msra.mxu0 0.0
  %569 = vmatprep.subr.mxu0 0.0
  %570 = vmatpush1.msra.mxu0 0.0
  %571 = vmatprep.subr.mxu0 0.0
  %572 = vmatpush1.msra.mxu0 0.0
  %573 = vmatprep.subr.mxu0 0.0
  %574 = vmatpush1.msra.mxu0 0.0
  %575 = vmatprep.subr.mxu0 0.0
  %576 = vmatpush1.msra.mxu0 0.0
  %577 = vmatprep.subr.mxu0 0.0
  %578 = vmatpush1.msra.mxu0 0.0
  %579 = vmatprep.subr.mxu0 0.0
  %580 = vmatpush1.msra.mxu0 0.0
  %581 = vmatprep.subr.mxu0 0.0
  %582 = vmatpush1.msra.mxu0 0.0
  %583 = vmatprep.subr.mxu0 0.0
  %584 = vmatpush1.msra.mxu0 0.0
  %585 = vmatprep.subr.mxu0 0.0
  %586 = vmatpush1.msra.mxu0 0.0
  %587 = vmatprep.subr.mxu0 0.0
  %588 = vmatpush1.msra.mxu0 0.0
  %589 = vmatprep.subr.mxu0 0.0
  %590 = vmatpush1.msra.mxu0 0.0
  %591 = vmatprep.subr.mxu0 0.0
  %592 = vmatpush1.msra.mxu0 0.0
  %593 = vmatprep.subr.mxu0 0.0
  %594 = vmatpush1.msra.mxu0 0.0
  %595 = vmatprep.subr.mxu0 0.0
  %596 = vmatpush1.msra.mxu0 0.0
  %597 = vmatprep.subr.mxu0 0.0
  %598 = vmatpush1.msra.mxu0 0.0
  %599 = vmatprep.subr.mxu0 0.0
  %600 = vmatpush1.msra.mxu0 0.0
  %601 = vmatprep.subr.mxu0 0.0
  %602 = vmatpush1.msra.mxu0 0.0
  %603 = vmatprep.subr.mxu0 0.0
  %604 = vmatpush1.msra.mxu0 0.0
  %605 = vmatprep.subr.mxu0 0.0
  %606 = vmatpush1.msra.mxu0 0.0
  %607 = vmatprep.subr.mxu0 0.0
  %608 = vmatpush1.msra.mxu0 0.0
  %609 = vmatprep.subr.mxu0 0.0
  %610 = vmatpush1.msra.mxu0 0.0
  %611 = vmatprep.subr.mxu0 0.0
  %612 = vmatpush1.msra.mxu0 0.0
  %613 = vmatprep.subr.mxu0 0.0
  %614 = vmatpush1.msra.mxu0 0.0
  %615 = vmatprep.subr.mxu0 0.0
  %616 = vmatpush1.msra.mxu0 0.0
  %617 = vmatprep.mubr.f32.mxu0 0.0
  %618 = vmatmul.mubr.f32.gmra.mrb[0].mxu0 %v539
  %v619 = vpop.f32.mrb[0].mxu0
  %v620 = vadd.f32 0.0, %v619
  %v621 = vpop.f32.mrb[0].mxu0
  %v622 = vadd.f32 0.0, %v621
  %623 = vdwg.mxu0
  %624 = vmatprep.subr.mxu0 %v547
  %625 = vmatpush1.msra.mxu0 %v545
  %626 = vmatprep.subr.mxu0 0.0
  %627 = vmatpush1.msra.mxu0 0.0
  %628 = vmatprep.subr.mxu0 0.0
  %629 = vmatpush1.msra.mxu0 0.0
  %630 = vmatprep.subr.mxu0 0.0
  %631 = vmatpush1.msra.mxu0 0.0
  %632 = vmatprep.subr.mxu0 0.0
  %633 = vmatpush1.msra.mxu0 0.0
  %634 = vmatprep.subr.mxu0 0.0
  %635 = vmatpush1.msra.mxu0 0.0
  %636 = vmatprep.subr.mxu0 0.0
  %637 = vmatpush1.msra.mxu0 0.0
  %638 = vmatprep.subr.mxu0 0.0
  %639 = vmatpush1.msra.mxu0 0.0
  %640 = vmatprep.subr.mxu0 0.0
  %641 = vmatpush1.msra.mxu0 0.0
  %642 = vmatprep.subr.mxu0 0.0
  %643 = vmatpush1.msra.mxu0 0.0
  %644 = vmatprep.subr.mxu0 0.0
  %645 = vmatpush1.msra.mxu0 0.0
  %646 = vmatprep.subr.mxu0 0.0
  %647 = vmatpush1.msra.mxu0 0.0
  %648 = vmatprep.subr.mxu0 0.0
  %649 = vmatpush1.msra.mxu0 0.0
  %650 = vmatprep.subr.mxu0 0.0
  %651 = vmatpush1.msra.mxu0 0.0
  %652 = vmatprep.subr.mxu0 0.0
  %653 = vmatpush1.msra.mxu0 0.0
  %654 = vmatprep.subr.mxu0 0.0
  %655 = vmatpush1.msra.mxu0 0.0
  %656 = vmatprep.subr.mxu0 0.0
  %657 = vmatpush1.msra.mxu0 0.0
  %658 = vmatprep.subr.mxu0 0.0
  %659 = vmatpush1.msra.mxu0 0.0
  %660 = vmatprep.subr.mxu0 0.0
  %661 = vmatpush1.msra.mxu0 0.0
  %662 = vmatprep.subr.mxu0 0.0
  %663 = vmatpush1.msra.mxu0 0.0
  %664 = vmatprep.subr.mxu0 0.0
  %665 = vmatpush1.msra.mxu0 0.0
  %666 = vmatprep.subr.mxu0 0.0
  %667 = vmatpush1.msra.mxu0 0.0
  %668 = vmatprep.subr.mxu0 0.0
  %669 = vmatpush1.msra.mxu0 0.0
  %670 = vmatprep.subr.mxu0 0.0
  %671 = vmatpush1.msra.mxu0 0.0
  %672 = vmatprep.subr.mxu0 0.0
  %673 = vmatpush1.msra.mxu0 0.0
  %674 = vmatprep.subr.mxu0 0.0
  %675 = vmatpush1.msra.mxu0 0.0
  %676 = vmatprep.subr.mxu0 0.0
  %677 = vmatpush1.msra.mxu0 0.0
  %678 = vmatprep.subr.mxu0 0.0
  %679 = vmatpush1.msra.mxu0 0.0
  %680 = vmatprep.subr.mxu0 0.0
  %681 = vmatpush1.msra.mxu0 0.0
  %682 = vmatprep.subr.mxu0 0.0
  %683 = vmatpush1.msra.mxu0 0.0
  %684 = vmatprep.subr.mxu0 0.0
  %685 = vmatpush1.msra.mxu0 0.0
  %686 = vmatprep.subr.mxu0 0.0
  %687 = vmatpush1.msra.mxu0 0.0
  %688 = vmatprep.mubr.f32.mxu0 0.0
  %689 = vmatmul.mubr.f32.gmra.mrb[0].mxu0 %v539
  %v690 = vpop.f32.mrb[0].mxu0
  %v691 = vadd.f32 0.0, %v690
  %v692 = vpop.f32.mrb[0].mxu0
  %v693 = vadd.f32 0.0, %v692
  %694 = vdwg.mxu0
  %695 = vmatprep.subr.mxu0 %v551
  %696 = vmatpush1.msra.mxu0 %v549
  %697 = vmatprep.subr.mxu0 0.0
  %698 = vmatpush1.msra.mxu0 0.0
  %699 = vmatprep.subr.mxu0 0.0
  %700 = vmatpush1.msra.mxu0 0.0
  %701 = vmatprep.subr.mxu0 0.0
  %702 = vmatpush1.msra.mxu0 0.0
  %703 = vmatprep.subr.mxu0 0.0
  %704 = vmatpush1.msra.mxu0 0.0
  %705 = vmatprep.subr.mxu0 0.0
  %706 = vmatpush1.msra.mxu0 0.0
  %707 = vmatprep.subr.mxu0 0.0
  %708 = vmatpush1.msra.mxu0 0.0
  %709 = vmatprep.subr.mxu0 0.0
  %710 = vmatpush1.msra.mxu0 0.0
  %711 = vmatprep.subr.mxu0 0.0
  %712 = vmatpush1.msra.mxu0 0.0
  %713 = vmatprep.subr.mxu0 0.0
  %714 = vmatpush1.msra.mxu0 0.0
  %715 = vmatprep.subr.mxu0 0.0
  %716 = vmatpush1.msra.mxu0 0.0
  %717 = vmatprep.subr.mxu0 0.0
  %718 = vmatpush1.msra.mxu0 0.0
  %719 = vmatprep.subr.mxu0 0.0
  %720 = vmatpush1.msra.mxu0 0.0
  %721 = vmatprep.subr.mxu0 0.0
  %722 = vmatpush1.msra.mxu0 0.0
  %723 = vmatprep.subr.mxu0 0.0
  %724 = vmatpush1.msra.mxu0 0.0
  %725 = vmatprep.subr.mxu0 0.0
  %726 = vmatpush1.msra.mxu0 0.0
  %727 = vmatprep.subr.mxu0 0.0
  %728 = vmatpush1.msra.mxu0 0.0
  %729 = vmatprep.subr.mxu0 0.0
  %730 = vmatpush1.msra.mxu0 0.0
  %731 = vmatprep.subr.mxu0 0.0
  %732 = vmatpush1.msra.mxu0 0.0
  %733 = vmatprep.subr.mxu0 0.0
  %734 = vmatpush1.msra.mxu0 0.0
  %735 = vmatprep.subr.mxu0 0.0
  %736 = vmatpush1.msra.mxu0 0.0
  %737 = vmatprep.subr.mxu0 0.0
  %738 = vmatpush1.msra.mxu0 0.0
  %739 = vmatprep.subr.mxu0 0.0
  %740 = vmatpush1.msra.mxu0 0.0
  %741 = vmatprep.subr.mxu0 0.0
  %742 = vmatpush1.msra.mxu0 0.0
  %743 = vmatprep.subr.mxu0 0.0
  %744 = vmatpush1.msra.mxu0 0.0
  %745 = vmatprep.subr.mxu0 0.0
  %746 = vmatpush1.msra.mxu0 0.0
  %747 = vmatprep.subr.mxu0 0.0
  %748 = vmatpush1.msra.mxu0 0.0
  %749 = vmatprep.subr.mxu0 0.0
  %750 = vmatpush1.msra.mxu0 0.0
  %751 = vmatprep.subr.mxu0 0.0
  %752 = vmatpush1.msra.mxu0 0.0
  %753 = vmatprep.subr.mxu0 0.0
  %754 = vmatpush1.msra.mxu0 0.0
  %755 = vmatprep.subr.mxu0 0.0
  %756 = vmatpush1.msra.mxu0 0.0
  %757 = vmatprep.subr.mxu0 0.0
  %758 = vmatpush1.msra.mxu0 0.0
  %759 = vmatprep.mubr.f32.mxu0 0.0
  %760 = vmatmul.mubr.f32.gmra.mrb[0].mxu0 %v539
  %v761 = vpop.f32.mrb[0].mxu0
  %v762 = vadd.f32 0.0, %v761
  %v763 = vpop.f32.mrb[0].mxu0
  %v764 = vadd.f32 0.0, %v763
  %765 = vdwg.mxu0
  %v766 = vadd.f32 %v369, %v620
  %v767 = vadd.f32 %v371, %v622
  %v768 = vadd.f32 %v440, %v691
  %v769 = vadd.f32 %v442, %v693
  %v770 = vadd.f32 %v511, %v762
  %v771 = vadd.f32 %v513, %v764
  %s772 = scalar_lea.vmem %s1, 24
  %v773 = vld [vmem:[%s772] sm:$0xff]
  %774 = vrot.lane.b32.xlu0 %v22, 110
  %v775 = vpop.permute.xlu0 %774
  %776 = vrot.lane.b32.xlu0 %v33, 110
  %v777 = vpop.permute.xlu0 %776
  %778 = vrot.lane.b32.xlu0 %v23, 110
  %v779 = vpop.permute.xlu0 %778
  %780 = vrot.lane.b32.xlu0 %v34, 110
  %v781 = vpop.permute.xlu0 %780
  %782 = vrot.lane.b32.xlu0 %v24, 110
  %v783 = vpop.permute.xlu0 %782
  %784 = vrot.lane.b32.xlu0 %v35, 110
  %v785 = vpop.permute.xlu0 %784
  %786 = vrot.lane.b32.xlu0 %v25, 110
  %v787 = vpop.permute.xlu0 %786
  %vm788 = vcmask 900096
  %v789 = vsel %vm788, %v775, %v777
  %v790 = vsel %vm788, %v777, %v779
  %v791 = vsel %vm788, %v779, %v781
  %v792 = vsel %vm788, %v781, %v783
  %v793 = vsel %vm788, %v783, %v785
  %v794 = vsel %vm788, %v785, %v787
  %v796 = vsel %vm57, %v773, 0
  %v798 = vsel %vm61, %v789, 0
  %v800 = vsel %vm61, %v790, 0
  %v802 = vsel %vm61, %v791, 0
  %v804 = vsel %vm61, %v792, 0
  %v806 = vsel %vm61, %v793, 0
  %v808 = vsel %vm61, %v794, 0
  %810 = vmatprep.subr.mxu0 %v800
  %811 = vmatpush1.msra.mxu0 %v798
  %812 = vmatprep.subr.mxu0 0.0
  %813 = vmatpush1.msra.mxu0 0.0
  %814 = vmatprep.subr.mxu0 0.0
  %815 = vmatpush1.msra.mxu0 0.0
  %816 = vmatprep.subr.mxu0 0.0
  %817 = vmatpush1.msra.mxu0 0.0
  %818 = vmatprep.subr.mxu0 0.0
  %819 = vmatpush1.msra.mxu0 0.0
  %820 = vmatprep.subr.mxu0 0.0
  %821 = vmatpush1.msra.mxu0 0.0
  %822 = vmatprep.subr.mxu0 0.0
  %823 = vmatpush1.msra.mxu0 0.0
  %824 = vmatprep.subr.mxu0 0.0
  %825 = vmatpush1.msra.mxu0 0.0
  %826 = vmatprep.subr.mxu0 0.0
  %827 = vmatpush1.msra.mxu0 0.0
  %828 = vmatprep.subr.mxu0 0.0
  %829 = vmatpush1.msra.mxu0 0.0
  %830 = vmatprep.subr.mxu0 0.0
  %831 = vmatpush1.msra.mxu0 0.0
  %832 = vmatprep.subr.mxu0 0.0
  %833 = vmatpush1.msra.mxu0 0.0
  %834 = vmatprep.subr.mxu0 0.0
  %835 = vmatpush1.msra.mxu0 0.0
  %836 = vmatprep.subr.mxu0 0.0
  %837 = vmatpush1.msra.mxu0 0.0
  %838 = vmatprep.subr.mxu0 0.0
  %839 = vmatpush1.msra.mxu0 0.0
  %840 = vmatprep.subr.mxu0 0.0
  %841 = vmatpush1.msra.mxu0 0.0
  %842 = vmatprep.subr.mxu0 0.0
  %843 = vmatpush1.msra.mxu0 0.0
  %844 = vmatprep.subr.mxu0 0.0
  %845 = vmatpush1.msra.mxu0 0.0
  %846 = vmatprep.subr.mxu0 0.0
  %847 = vmatpush1.msra.mxu0 0.0
  %848 = vmatprep.subr.mxu0 0.0
  %849 = vmatpush1.msra.mxu0 0.0
  %850 = vmatprep.subr.mxu0 0.0
  %851 = vmatpush1.msra.mxu0 0.0
  %852 = vmatprep.subr.mxu0 0.0
  %853 = vmatpush1.msra.mxu0 0.0
  %854 = vmatprep.subr.mxu0 0.0
  %855 = vmatpush1.msra.mxu0 0.0
  %856 = vmatprep.subr.mxu0 0.0
  %857 = vmatpush1.msra.mxu0 0.0
  %858 = vmatprep.subr.mxu0 0.0
  %859 = vmatpush1.msra.mxu0 0.0
  %860 = vmatprep.subr.mxu0 0.0
  %861 = vmatpush1.msra.mxu0 0.0
  %862 = vmatprep.subr.mxu0 0.0
  %863 = vmatpush1.msra.mxu0 0.0
  %864 = vmatprep.subr.mxu0 0.0
  %865 = vmatpush1.msra.mxu0 0.0
  %866 = vmatprep.subr.mxu0 0.0
  %867 = vmatpush1.msra.mxu0 0.0
  %868 = vmatprep.subr.mxu0 0.0
  %869 = vmatpush1.msra.mxu0 0.0
  %870 = vmatprep.subr.mxu0 0.0
  %871 = vmatpush1.msra.mxu0 0.0
  %872 = vmatprep.subr.mxu0 0.0
  %873 = vmatpush1.msra.mxu0 0.0
  %874 = vmatprep.mubr.f32.mxu0 0.0
  %875 = vmatmul.mubr.f32.gmra.mrb[0].mxu0 %v796
  %v876 = vpop.f32.mrb[0].mxu0
  %v877 = vadd.f32 0.0, %v876
  %v878 = vpop.f32.mrb[0].mxu0
  %v879 = vadd.f32 0.0, %v878
  %880 = vdwg.mxu0
  %881 = vmatprep.subr.mxu0 %v804
  %882 = vmatpush1.msra.mxu0 %v802
  %883 = vmatprep.subr.mxu0 0.0
  %884 = vmatpush1.msra.mxu0 0.0
  %885 = vmatprep.subr.mxu0 0.0
  %886 = vmatpush1.msra.mxu0 0.0
  %887 = vmatprep.subr.mxu0 0.0
  %888 = vmatpush1.msra.mxu0 0.0
  %889 = vmatprep.subr.mxu0 0.0
  %890 = vmatpush1.msra.mxu0 0.0
  %891 = vmatprep.subr.mxu0 0.0
  %892 = vmatpush1.msra.mxu0 0.0
  %893 = vmatprep.subr.mxu0 0.0
  %894 = vmatpush1.msra.mxu0 0.0
  %895 = vmatprep.subr.mxu0 0.0
  %896 = vmatpush1.msra.mxu0 0.0
  %897 = vmatprep.subr.mxu0 0.0
  %898 = vmatpush1.msra.mxu0 0.0
  %899 = vmatprep.subr.mxu0 0.0
  %900 = vmatpush1.msra.mxu0 0.0
  %901 = vmatprep.subr.mxu0 0.0
  %902 = vmatpush1.msra.mxu0 0.0
  %903 = vmatprep.subr.mxu0 0.0
  %904 = vmatpush1.msra.mxu0 0.0
  %905 = vmatprep.subr.mxu0 0.0
  %906 = vmatpush1.msra.mxu0 0.0
  %907 = vmatprep.subr.mxu0 0.0
  %908 = vmatpush1.msra.mxu0 0.0
  %909 = vmatprep.subr.mxu0 0.0
  %910 = vmatpush1.msra.mxu0 0.0
  %911 = vmatprep.subr.mxu0 0.0
  %912 = vmatpush1.msra.mxu0 0.0
  %913 = vmatprep.subr.mxu0 0.0
  %914 = vmatpush1.msra.mxu0 0.0
  %915 = vmatprep.subr.mxu0 0.0
  %916 = vmatpush1.msra.mxu0 0.0
  %917 = vmatprep.subr.mxu0 0.0
  %918 = vmatpush1.msra.mxu0 0.0
  %919 = vmatprep.subr.mxu0 0.0
  %920 = vmatpush1.msra.mxu0 0.0
  %921 = vmatprep.subr.mxu0 0.0
  %922 = vmatpush1.msra.mxu0 0.0
  %923 = vmatprep.subr.mxu0 0.0
  %924 = vmatpush1.msra.mxu0 0.0
  %925 = vmatprep.subr.mxu0 0.0
  %926 = vmatpush1.msra.mxu0 0.0
  %927 = vmatprep.subr.mxu0 0.0
  %928 = vmatpush1.msra.mxu0 0.0
  %929 = vmatprep.subr.mxu0 0.0
  %930 = vmatpush1.msra.mxu0 0.0
  %931 = vmatprep.subr.mxu0 0.0
  %932 = vmatpush1.msra.mxu0 0.0
  %933 = vmatprep.subr.mxu0 0.0
  %934 = vmatpush1.msra.mxu0 0.0
  %935 = vmatprep.subr.mxu0 0.0
  %936 = vmatpush1.msra.mxu0 0.0
  %937 = vmatprep.subr.mxu0 0.0
  %938 = vmatpush1.msra.mxu0 0.0
  %939 = vmatprep.subr.mxu0 0.0
  %940 = vmatpush1.msra.mxu0 0.0
  %941 = vmatprep.subr.mxu0 0.0
  %942 = vmatpush1.msra.mxu0 0.0
  %943 = vmatprep.subr.mxu0 0.0
  %944 = vmatpush1.msra.mxu0 0.0
  %945 = vmatprep.mubr.f32.mxu0 0.0
  %946 = vmatmul.mubr.f32.gmra.mrb[0].mxu0 %v796
  %v947 = vpop.f32.mrb[0].mxu0
  %v948 = vadd.f32 0.0, %v947
  %v949 = vpop.f32.mrb[0].mxu0
  %v950 = vadd.f32 0.0, %v949
  %951 = vdwg.mxu0
  %952 = vmatprep.subr.mxu0 %v808
  %953 = vmatpush1.msra.mxu0 %v806
  %954 = vmatprep.subr.mxu0 0.0
  %955 = vmatpush1.msra.mxu0 0.0
  %956 = vmatprep.subr.mxu0 0.0
  %957 = vmatpush1.msra.mxu0 0.0
  %958 = vmatprep.subr.mxu0 0.0
  %959 = vmatpush1.msra.mxu0 0.0
  %960 = vmatprep.subr.mxu0 0.0
  %961 = vmatpush1.msra.mxu0 0.0
  %962 = vmatprep.subr.mxu0 0.0
  %963 = vmatpush1.msra.mxu0 0.0
  %964 = vmatprep.subr.mxu0 0.0
  %965 = vmatpush1.msra.mxu0 0.0
  %966 = vmatprep.subr.mxu0 0.0
  %967 = vmatpush1.msra.mxu0 0.0
  %968 = vmatprep.subr.mxu0 0.0
  %969 = vmatpush1.msra.mxu0 0.0
  %970 = vmatprep.subr.mxu0 0.0
  %971 = vmatpush1.msra.mxu0 0.0
  %972 = vmatprep.subr.mxu0 0.0
  %973 = vmatpush1.msra.mxu0 0.0
  %974 = vmatprep.subr.mxu0 0.0
  %975 = vmatpush1.msra.mxu0 0.0
  %976 = vmatprep.subr.mxu0 0.0
  %977 = vmatpush1.msra.mxu0 0.0
  %978 = vmatprep.subr.mxu0 0.0
  %979 = vmatpush1.msra.mxu0 0.0
  %980 = vmatprep.subr.mxu0 0.0
  %981 = vmatpush1.msra.mxu0 0.0
  %982 = vmatprep.subr.mxu0 0.0
  %983 = vmatpush1.msra.mxu0 0.0
  %984 = vmatprep.subr.mxu0 0.0
  %985 = vmatpush1.msra.mxu0 0.0
  %986 = vmatprep.subr.mxu0 0.0
  %987 = vmatpush1.msra.mxu0 0.0
  %988 = vmatprep.subr.mxu0 0.0
  %989 = vmatpush1.msra.mxu0 0.0
  %990 = vmatprep.subr.mxu0 0.0
  %991 = vmatpush1.msra.mxu0 0.0
  %992 = vmatprep.subr.mxu0 0.0
  %993 = vmatpush1.msra.mxu0 0.0
  %994 = vmatprep.subr.mxu0 0.0
  %995 = vmatpush1.msra.mxu0 0.0
  %996 = vmatprep.subr.mxu0 0.0
  %997 = vmatpush1.msra.mxu0 0.0
  %998 = vmatprep.subr.mxu0 0.0
  %999 = vmatpush1.msra.mxu0 0.0
  %1000 = vmatprep.subr.mxu0 0.0
  %1001 = vmatpush1.msra.mxu0 0.0
  %1002 = vmatprep.subr.mxu0 0.0
  %1003 = vmatpush1.msra.mxu0 0.0
  %1004 = vmatprep.subr.mxu0 0.0
  %1005 = vmatpush1.msra.mxu0 0.0
  %1006 = vmatprep.subr.mxu0 0.0
  %1007 = vmatpush1.msra.mxu0 0.0
  %1008 = vmatprep.subr.mxu0 0.0
  %1009 = vmatpush1.msra.mxu0 0.0
  %1010 = vmatprep.subr.mxu0 0.0
  %1011 = vmatpush1.msra.mxu0 0.0
  %1012 = vmatprep.subr.mxu0 0.0
  %1013 = vmatpush1.msra.mxu0 0.0
  %1014 = vmatprep.subr.mxu0 0.0
  %1015 = vmatpush1.msra.mxu0 0.0
  %1016 = vmatprep.mubr.f32.mxu0 0.0
  %1017 = vmatmul.mubr.f32.gmra.mrb[0].mxu0 %v796
  %v1018 = vpop.f32.mrb[0].mxu0
  %v1019 = vadd.f32 0.0, %v1018
  %v1020 = vpop.f32.mrb[0].mxu0
  %v1021 = vadd.f32 0.0, %v1020
  %1022 = vdwg.mxu0
  %v1023 = vadd.f32 %v766, %v877
  %v1024 = vadd.f32 %v767, %v879
  %v1025 = vadd.f32 %v768, %v948
  %v1026 = vadd.f32 %v769, %v950
  %v1027 = vadd.f32 %v770, %v1019
  %v1028 = vadd.f32 %v771, %v1021
  %s1029 = scalar_lea.vmem %s1, 32
  %v1030 = vld [vmem:[%s1029] sm:$0xff]
  %1031 = vrot.lane.b32.xlu0 %v22, 109
  %v1032 = vpop.permute.xlu0 %1031
  %1033 = vrot.lane.b32.xlu0 %v33, 109
  %v1034 = vpop.permute.xlu0 %1033
  %1035 = vrot.lane.b32.xlu0 %v23, 109
  %v1036 = vpop.permute.xlu0 %1035
  %1037 = vrot.lane.b32.xlu0 %v34, 109
  %v1038 = vpop.permute.xlu0 %1037
  %1039 = vrot.lane.b32.xlu0 %v24, 109
  %v1040 = vpop.permute.xlu0 %1039
  %1041 = vrot.lane.b32.xlu0 %v35, 109
  %v1042 = vpop.permute.xlu0 %1041
  %1043 = vrot.lane.b32.xlu0 %v25, 109
  %v1044 = vpop.permute.xlu0 %1043
  %vm1045 = vcmask 891904
  %v1046 = vsel %vm1045, %v1032, %v1034
  %v1047 = vsel %vm1045, %v1034, %v1036
  %v1048 = vsel %vm1045, %v1036, %v1038
  %v1049 = vsel %vm1045, %v1038, %v1040
  %v1050 = vsel %vm1045, %v1040, %v1042
  %v1051 = vsel %vm1045, %v1042, %v1044
  %v1053 = vsel %vm57, %v1030, 0
  %v1055 = vsel %vm61, %v1046, 0
  %v1057 = vsel %vm61, %v1047, 0
  %v1059 = vsel %vm61, %v1048, 0
  %v1061 = vsel %vm61, %v1049, 0
  %v1063 = vsel %vm61, %v1050, 0
  %v1065 = vsel %vm61, %v1051, 0
  %1067 = vmatprep.subr.mxu0 %v1057
  %1068 = vmatpush1.msra.mxu0 %v1055
  %1069 = vmatprep.subr.mxu0 0.0
  %1070 = vmatpush1.msra.mxu0 0.0
  %1071 = vmatprep.subr.mxu0 0.0
  %1072 = vmatpush1.msra.mxu0 0.0
  %1073 = vmatprep.subr.mxu0 0.0
  %1074 = vmatpush1.msra.mxu0 0.0
  %1075 = vmatprep.subr.mxu0 0.0
  %1076 = vmatpush1.msra.mxu0 0.0
  %1077 = vmatprep.subr.mxu0 0.0
  %1078 = vmatpush1.msra.mxu0 0.0
  %1079 = vmatprep.subr.mxu0 0.0
  %1080 = vmatpush1.msra.mxu0 0.0
  %1081 = vmatprep.subr.mxu0 0.0
  %1082 = vmatpush1.msra.mxu0 0.0
  %1083 = vmatprep.subr.mxu0 0.0
  %1084 = vmatpush1.msra.mxu0 0.0
  %1085 = vmatprep.subr.mxu0 0.0
  %1086 = vmatpush1.msra.mxu0 0.0
  %1087 = vmatprep.subr.mxu0 0.0
  %1088 = vmatpush1.msra.mxu0 0.0
  %1089 = vmatprep.subr.mxu0 0.0
  %1090 = vmatpush1.msra.mxu0 0.0
  %1091 = vmatprep.subr.mxu0 0.0
  %1092 = vmatpush1.msra.mxu0 0.0
  %1093 = vmatprep.subr.mxu0 0.0
  %1094 = vmatpush1.msra.mxu0 0.0
  %1095 = vmatprep.subr.mxu0 0.0
  %1096 = vmatpush1.msra.mxu0 0.0
  %1097 = vmatprep.subr.mxu0 0.0
  %1098 = vmatpush1.msra.mxu0 0.0
  %1099 = vmatprep.subr.mxu0 0.0
  %1100 = vmatpush1.msra.mxu0 0.0
  %1101 = vmatprep.subr.mxu0 0.0
  %1102 = vmatpush1.msra.mxu0 0.0
  %1103 = vmatprep.subr.mxu0 0.0
  %1104 = vmatpush1.msra.mxu0 0.0
  %1105 = vmatprep.subr.mxu0 0.0
  %1106 = vmatpush1.msra.mxu0 0.0
  %1107 = vmatprep.subr.mxu0 0.0
  %1108 = vmatpush1.msra.mxu0 0.0
  %1109 = vmatprep.subr.mxu0 0.0
  %1110 = vmatpush1.msra.mxu0 0.0
  %1111 = vmatprep.subr.mxu0 0.0
  %1112 = vmatpush1.msra.mxu0 0.0
  %1113 = vmatprep.subr.mxu0 0.0
  %1114 = vmatpush1.msra.mxu0 0.0
  %1115 = vmatprep.subr.mxu0 0.0
  %1116 = vmatpush1.msra.mxu0 0.0
  %1117 = vmatprep.subr.mxu0 0.0
  %1118 = vmatpush1.msra.mxu0 0.0
  %1119 = vmatprep.subr.mxu0 0.0
  %1120 = vmatpush1.msra.mxu0 0.0
  %1121 = vmatprep.subr.mxu0 0.0
  %1122 = vmatpush1.msra.mxu0 0.0
  %1123 = vmatprep.subr.mxu0 0.0
  %1124 = vmatpush1.msra.mxu0 0.0
  %1125 = vmatprep.subr.mxu0 0.0
  %1126 = vmatpush1.msra.mxu0 0.0
  %1127 = vmatprep.subr.mxu0 0.0
  %1128 = vmatpush1.msra.mxu0 0.0
  %1129 = vmatprep.subr.mxu0 0.0
  %1130 = vmatpush1.msra.mxu0 0.0
  %1131 = vmatprep.mubr.f32.mxu0 0.0
  %1132 = vmatmul.mubr.f32.gmra.mrb[0].mxu0 %v1053
  %v1133 = vpop.f32.mrb[0].mxu0
  %v1134 = vadd.f32 0.0, %v1133
  %v1135 = vpop.f32.mrb[0].mxu0
  %v1136 = vadd.f32 0.0, %v1135
  %1137 = vdwg.mxu0
  %1138 = vmatprep.subr.mxu0 %v1061
  %1139 = vmatpush1.msra.mxu0 %v1059
  %1140 = vmatprep.subr.mxu0 0.0
  %1141 = vmatpush1.msra.mxu0 0.0
  %1142 = vmatprep.subr.mxu0 0.0
  %1143 = vmatpush1.msra.mxu0 0.0
  %1144 = vmatprep.subr.mxu0 0.0
  %1145 = vmatpush1.msra.mxu0 0.0
  %1146 = vmatprep.subr.mxu0 0.0
  %1147 = vmatpush1.msra.mxu0 0.0
  %1148 = vmatprep.subr.mxu0 0.0
  %1149 = vmatpush1.msra.mxu0 0.0
  %1150 = vmatprep.subr.mxu0 0.0
  %1151 = vmatpush1.msra.mxu0 0.0
  %1152 = vmatprep.subr.mxu0 0.0
  %1153 = vmatpush1.msra.mxu0 0.0
  %1154 = vmatprep.subr.mxu0 0.0
  %1155 = vmatpush1.msra.mxu0 0.0
  %1156 = vmatprep.subr.mxu0 0.0
  %1157 = vmatpush1.msra.mxu0 0.0
  %1158 = vmatprep.subr.mxu0 0.0
  %1159 = vmatpush1.msra.mxu0 0.0
  %1160 = vmatprep.subr.mxu0 0.0
  %1161 = vmatpush1.msra.mxu0 0.0
  %1162 = vmatprep.subr.mxu0 0.0
  %1163 = vmatpush1.msra.mxu0 0.0
  %1164 = vmatprep.subr.mxu0 0.0
  %1165 = vmatpush1.msra.mxu0 0.0
  %1166 = vmatprep.subr.mxu0 0.0
  %1167 = vmatpush1.msra.mxu0 0.0
  %1168 = vmatprep.subr.mxu0 0.0
  %1169 = vmatpush1.msra.mxu0 0.0
  %1170 = vmatprep.subr.mxu0 0.0
  %1171 = vmatpush1.msra.mxu0 0.0
  %1172 = vmatprep.subr.mxu0 0.0
  %1173 = vmatpush1.msra.mxu0 0.0
  %1174 = vmatprep.subr.mxu0 0.0
  %1175 = vmatpush1.msra.mxu0 0.0
  %1176 = vmatprep.subr.mxu0 0.0
  %1177 = vmatpush1.msra.mxu0 0.0
  %1178 = vmatprep.subr.mxu0 0.0
  %1179 = vmatpush1.msra.mxu0 0.0
  %1180 = vmatprep.subr.mxu0 0.0
  %1181 = vmatpush1.msra.mxu0 0.0
  %1182 = vmatprep.subr.mxu0 0.0
  %1183 = vmatpush1.msra.mxu0 0.0
  %1184 = vmatprep.subr.mxu0 0.0
  %1185 = vmatpush1.msra.mxu0 0.0
  %1186 = vmatprep.subr.mxu0 0.0
  %1187 = vmatpush1.msra.mxu0 0.0
  %1188 = vmatprep.subr.mxu0 0.0
  %1189 = vmatpush1.msra.mxu0 0.0
  %1190 = vmatprep.subr.mxu0 0.0
  %1191 = vmatpush1.msra.mxu0 0.0
  %1192 = vmatprep.subr.mxu0 0.0
  %1193 = vmatpush1.msra.mxu0 0.0
  %1194 = vmatprep.subr.mxu0 0.0
  %1195 = vmatpush1.msra.mxu0 0.0
  %1196 = vmatprep.subr.mxu0 0.0
  %1197 = vmatpush1.msra.mxu0 0.0
  %1198 = vmatprep.subr.mxu0 0.0
  %1199 = vmatpush1.msra.mxu0 0.0
  %1200 = vmatprep.subr.mxu0 0.0
  %1201 = vmatpush1.msra.mxu0 0.0
  %1202 = vmatprep.mubr.f32.mxu0 0.0
  %1203 = vmatmul.mubr.f32.gmra.mrb[0].mxu0 %v1053
  %v1204 = vpop.f32.mrb[0].mxu0
  %v1205 = vadd.f32 0.0, %v1204
  %v1206 = vpop.f32.mrb[0].mxu0
  %v1207 = vadd.f32 0.0, %v1206
  %1208 = vdwg.mxu0
  %1209 = vmatprep.subr.mxu0 %v1065
  %1210 = vmatpush1.msra.mxu0 %v1063
  %1211 = vmatprep.subr.mxu0 0.0
  %1212 = vmatpush1.msra.mxu0 0.0
  %1213 = vmatprep.subr.mxu0 0.0
  %1214 = vmatpush1.msra.mxu0 0.0
  %1215 = vmatprep.subr.mxu0 0.0
  %1216 = vmatpush1.msra.mxu0 0.0
  %1217 = vmatprep.subr.mxu0 0.0
  %1218 = vmatpush1.msra.mxu0 0.0
  %1219 = vmatprep.subr.mxu0 0.0
  %1220 = vmatpush1.msra.mxu0 0.0
  %1221 = vmatprep.subr.mxu0 0.0
  %1222 = vmatpush1.msra.mxu0 0.0
  %1223 = vmatprep.subr.mxu0 0.0
  %1224 = vmatpush1.msra.mxu0 0.0
  %1225 = vmatprep.subr.mxu0 0.0
  %1226 = vmatpush1.msra.mxu0 0.0
  %1227 = vmatprep.subr.mxu0 0.0
  %1228 = vmatpush1.msra.mxu0 0.0
  %1229 = vmatprep.subr.mxu0 0.0
  %1230 = vmatpush1.msra.mxu0 0.0
  %1231 = vmatprep.subr.mxu0 0.0
  %1232 = vmatpush1.msra.mxu0 0.0
  %1233 = vmatprep.subr.mxu0 0.0
  %1234 = vmatpush1.msra.mxu0 0.0
  %1235 = vmatprep.subr.mxu0 0.0
  %1236 = vmatpush1.msra.mxu0 0.0
  %1237 = vmatprep.subr.mxu0 0.0
  %1238 = vmatpush1.msra.mxu0 0.0
  %1239 = vmatprep.subr.mxu0 0.0
  %1240 = vmatpush1.msra.mxu0 0.0
  %1241 = vmatprep.subr.mxu0 0.0
  %1242 = vmatpush1.msra.mxu0 0.0
  %1243 = vmatprep.subr.mxu0 0.0
  %1244 = vmatpush1.msra.mxu0 0.0
  %1245 = vmatprep.subr.mxu0 0.0
  %1246 = vmatpush1.msra.mxu0 0.0
  %1247 = vmatprep.subr.mxu0 0.0
  %1248 = vmatpush1.msra.mxu0 0.0
  %1249 = vmatprep.subr.mxu0 0.0
  %1250 = vmatpush1.msra.mxu0 0.0
  %1251 = vmatprep.subr.mxu0 0.0
  %1252 = vmatpush1.msra.mxu0 0.0
  %1253 = vmatprep.subr.mxu0 0.0
  %1254 = vmatpush1.msra.mxu0 0.0
  %1255 = vmatprep.subr.mxu0 0.0
  %1256 = vmatpush1.msra.mxu0 0.0
  %1257 = vmatprep.subr.mxu0 0.0
  %1258 = vmatpush1.msra.mxu0 0.0
  %1259 = vmatprep.subr.mxu0 0.0
  %1260 = vmatpush1.msra.mxu0 0.0
  %1261 = vmatprep.subr.mxu0 0.0
  %1262 = vmatpush1.msra.mxu0 0.0
  %1263 = vmatprep.subr.mxu0 0.0
  %1264 = vmatpush1.msra.mxu0 0.0
  %1265 = vmatprep.subr.mxu0 0.0
  %1266 = vmatpush1.msra.mxu0 0.0
  %1267 = vmatprep.subr.mxu0 0.0
  %1268 = vmatpush1.msra.mxu0 0.0
  %1269 = vmatprep.subr.mxu0 0.0
  %1270 = vmatpush1.msra.mxu0 0.0
  %1271 = vmatprep.subr.mxu0 0.0
  %1272 = vmatpush1.msra.mxu0 0.0
  %1273 = vmatprep.mubr.f32.mxu0 0.0
  %1274 = vmatmul.mubr.f32.gmra.mrb[0].mxu0 %v1053
  %v1275 = vpop.f32.mrb[0].mxu0
  %v1276 = vadd.f32 0.0, %v1275
  %v1277 = vpop.f32.mrb[0].mxu0
  %v1278 = vadd.f32 0.0, %v1277
  %1279 = vdwg.mxu0
  %v1280 = vadd.f32 %v1023, %v1134
  %v1281 = vadd.f32 %v1024, %v1136
  %v1282 = vadd.f32 %v1025, %v1205
  %v1283 = vadd.f32 %v1026, %v1207
  %v1284 = vadd.f32 %v1027, %v1276
  %v1285 = vadd.f32 %v1028, %v1278
  %s1286 = scalar_lea.vmem %s1, 40
  %v1287 = vld [vmem:[%s1286] sm:$0xff]
  %1288 = vrot.lane.b32.xlu0 %v22, 108
  %v1289 = vpop.permute.xlu0 %1288
  %1290 = vrot.lane.b32.xlu0 %v33, 108
  %v1291 = vpop.permute.xlu0 %1290
  %1292 = vrot.lane.b32.xlu0 %v23, 108
  %v1293 = vpop.permute.xlu0 %1292
  %1294 = vrot.lane.b32.xlu0 %v34, 108
  %v1295 = vpop.permute.xlu0 %1294
  %1296 = vrot.lane.b32.xlu0 %v24, 108
  %v1297 = vpop.permute.xlu0 %1296
  %1298 = vrot.lane.b32.xlu0 %v35, 108
  %v1299 = vpop.permute.xlu0 %1298
  %1300 = vrot.lane.b32.xlu0 %v25, 108
  %v1301 = vpop.permute.xlu0 %1300
  %vm1302 = vcmask 883712
  %v1303 = vsel %vm1302, %v1289, %v1291
  %v1304 = vsel %vm1302, %v1291, %v1293
  %v1305 = vsel %vm1302, %v1293, %v1295
  %v1306 = vsel %vm1302, %v1295, %v1297
  %v1307 = vsel %vm1302, %v1297, %v1299
  %v1308 = vsel %vm1302, %v1299, %v1301
  %v1310 = vsel %vm57, %v1287, 0
  %v1312 = vsel %vm61, %v1303, 0
  %v1314 = vsel %vm61, %v1304, 0
  %v1316 = vsel %vm61, %v1305, 0
  %v1318 = vsel %vm61, %v1306, 0
  %v1320 = vsel %vm61, %v1307, 0
  %v1322 = vsel %vm61, %v1308, 0
  %1324 = vmatprep.subr.mxu0 %v1314
  %1325 = vmatpush1.msra.mxu0 %v1312
  %1326 = vmatprep.subr.mxu0 0.0
  %1327 = vmatpush1.msra.mxu0 0.0
  %1328 = vmatprep.subr.mxu0 0.0
  %1329 = vmatpush1.msra.mxu0 0.0
  %1330 = vmatprep.subr.mxu0 0.0
  %1331 = vmatpush1.msra.mxu0 0.0
  %1332 = vmatprep.subr.mxu0 0.0
  %1333 = vmatpush1.msra.mxu0 0.0
  %1334 = vmatprep.subr.mxu0 0.0
  %1335 = vmatpush1.msra.mxu0 0.0
  %1336 = vmatprep.subr.mxu0 0.0
  %1337 = vmatpush1.msra.mxu0 0.0
  %1338 = vmatprep.subr.mxu0 0.0
  %1339 = vmatpush1.msra.mxu0 0.0
  %1340 = vmatprep.subr.mxu0 0.0
  %1341 = vmatpush1.msra.mxu0 0.0
  %1342 = vmatprep.subr.mxu0 0.0
  %1343 = vmatpush1.msra.mxu0 0.0
  %1344 = vmatprep.subr.mxu0 0.0
  %1345 = vmatpush1.msra.mxu0 0.0
  %1346 = vmatprep.subr.mxu0 0.0
  %1347 = vmatpush1.msra.mxu0 0.0
  %1348 = vmatprep.subr.mxu0 0.0
  %1349 = vmatpush1.msra.mxu0 0.0
  %1350 = vmatprep.subr.mxu0 0.0
  %1351 = vmatpush1.msra.mxu0 0.0
  %1352 = vmatprep.subr.mxu0 0.0
  %1353 = vmatpush1.msra.mxu0 0.0
  %1354 = vmatprep.subr.mxu0 0.0
  %1355 = vmatpush1.msra.mxu0 0.0
  %1356 = vmatprep.subr.mxu0 0.0
  %1357 = vmatpush1.msra.mxu0 0.0
  %1358 = vmatprep.subr.mxu0 0.0
  %1359 = vmatpush1.msra.mxu0 0.0
  %1360 = vmatprep.subr.mxu0 0.0
  %1361 = vmatpush1.msra.mxu0 0.0
  %1362 = vmatprep.subr.mxu0 0.0
  %1363 = vmatpush1.msra.mxu0 0.0
  %1364 = vmatprep.subr.mxu0 0.0
  %1365 = vmatpush1.msra.mxu0 0.0
  %1366 = vmatprep.subr.mxu0 0.0
  %1367 = vmatpush1.msra.mxu0 0.0
  %1368 = vmatprep.subr.mxu0 0.0
  %1369 = vmatpush1.msra.mxu0 0.0
  %1370 = vmatprep.subr.mxu0 0.0
  %1371 = vmatpush1.msra.mxu0 0.0
  %1372 = vmatprep.subr.mxu0 0.0
  %1373 = vmatpush1.msra.mxu0 0.0
  %1374 = vmatprep.subr.mxu0 0.0
  %1375 = vmatpush1.msra.mxu0 0.0
  %1376 = vmatprep.subr.mxu0 0.0
  %1377 = vmatpush1.msra.mxu0 0.0
  %1378 = vmatprep.subr.mxu0 0.0
  %1379 = vmatpush1.msra.mxu0 0.0
  %1380 = vmatprep.subr.mxu0 0.0
  %1381 = vmatpush1.msra.mxu0 0.0
  %1382 = vmatprep.subr.mxu0 0.0
  %1383 = vmatpush1.msra.mxu0 0.0
  %1384 = vmatprep.subr.mxu0 0.0
  %1385 = vmatpush1.msra.mxu0 0.0
  %1386 = vmatprep.subr.mxu0 0.0
  %1387 = vmatpush1.msra.mxu0 0.0
  %1388 = vmatprep.mubr.f32.mxu0 0.0
  %1389 = vmatmul.mubr.f32.gmra.mrb[0].mxu0 %v1310
  %v1390 = vpop.f32.mrb[0].mxu0
  %v1391 = vadd.f32 0.0, %v1390
  %v1392 = vpop.f32.mrb[0].mxu0
  %v1393 = vadd.f32 0.0, %v1392
  %1394 = vdwg.mxu0
  %1395 = vmatprep.subr.mxu0 %v1318
  %1396 = vmatpush1.msra.mxu0 %v1316
  %1397 = vmatprep.subr.mxu0 0.0
  %1398 = vmatpush1.msra.mxu0 0.0
  %1399 = vmatprep.subr.mxu0 0.0
  %1400 = vmatpush1.msra.mxu0 0.0
  %1401 = vmatprep.subr.mxu0 0.0
  %1402 = vmatpush1.msra.mxu0 0.0
  %1403 = vmatprep.subr.mxu0 0.0
  %1404 = vmatpush1.msra.mxu0 0.0
  %1405 = vmatprep.subr.mxu0 0.0
  %1406 = vmatpush1.msra.mxu0 0.0
  %1407 = vmatprep.subr.mxu0 0.0
  %1408 = vmatpush1.msra.mxu0 0.0
  %1409 = vmatprep.subr.mxu0 0.0
  %1410 = vmatpush1.msra.mxu0 0.0
  %1411 = vmatprep.subr.mxu0 0.0
  %1412 = vmatpush1.msra.mxu0 0.0
  %1413 = vmatprep.subr.mxu0 0.0
  %1414 = vmatpush1.msra.mxu0 0.0
  %1415 = vmatprep.subr.mxu0 0.0
  %1416 = vmatpush1.msra.mxu0 0.0
  %1417 = vmatprep.subr.mxu0 0.0
  %1418 = vmatpush1.msra.mxu0 0.0
  %1419 = vmatprep.subr.mxu0 0.0
  %1420 = vmatpush1.msra.mxu0 0.0
  %1421 = vmatprep.subr.mxu0 0.0
  %1422 = vmatpush1.msra.mxu0 0.0
  %1423 = vmatprep.subr.mxu0 0.0
  %1424 = vmatpush1.msra.mxu0 0.0
  %1425 = vmatprep.subr.mxu0 0.0
  %1426 = vmatpush1.msra.mxu0 0.0
  %1427 = vmatprep.subr.mxu0 0.0
  %1428 = vmatpush1.msra.mxu0 0.0
  %1429 = vmatprep.subr.mxu0 0.0
  %1430 = vmatpush1.msra.mxu0 0.0
  %1431 = vmatprep.subr.mxu0 0.0
  %1432 = vmatpush1.msra.mxu0 0.0
  %1433 = vmatprep.subr.mxu0 0.0
  %1434 = vmatpush1.msra.mxu0 0.0
  %1435 = vmatprep.subr.mxu0 0.0
  %1436 = vmatpush1.msra.mxu0 0.0
  %1437 = vmatprep.subr.mxu0 0.0
  %1438 = vmatpush1.msra.mxu0 0.0
  %1439 = vmatprep.subr.mxu0 0.0
  %1440 = vmatpush1.msra.mxu0 0.0
  %1441 = vmatprep.subr.mxu0 0.0
  %1442 = vmatpush1.msra.mxu0 0.0
  %1443 = vmatprep.subr.mxu0 0.0
  %1444 = vmatpush1.msra.mxu0 0.0
  %1445 = vmatprep.subr.mxu0 0.0
  %1446 = vmatpush1.msra.mxu0 0.0
  %1447 = vmatprep.subr.mxu0 0.0
  %1448 = vmatpush1.msra.mxu0 0.0
  %1449 = vmatprep.subr.mxu0 0.0
  %1450 = vmatpush1.msra.mxu0 0.0
  %1451 = vmatprep.subr.mxu0 0.0
  %1452 = vmatpush1.msra.mxu0 0.0
  %1453 = vmatprep.subr.mxu0 0.0
  %1454 = vmatpush1.msra.mxu0 0.0
  %1455 = vmatprep.subr.mxu0 0.0
  %1456 = vmatpush1.msra.mxu0 0.0
  %1457 = vmatprep.subr.mxu0 0.0
  %1458 = vmatpush1.msra.mxu0 0.0
  %1459 = vmatprep.mubr.f32.mxu0 0.0
  %1460 = vmatmul.mubr.f32.gmra.mrb[0].mxu0 %v1310
  %v1461 = vpop.f32.mrb[0].mxu0
  %v1462 = vadd.f32 0.0, %v1461
  %v1463 = vpop.f32.mrb[0].mxu0
  %v1464 = vadd.f32 0.0, %v1463
  %1465 = vdwg.mxu0
  %1466 = vmatprep.subr.mxu0 %v1322
  %1467 = vmatpush1.msra.mxu0 %v1320
  %1468 = vmatprep.subr.mxu0 0.0
  %1469 = vmatpush1.msra.mxu0 0.0
  %1470 = vmatprep.subr.mxu0 0.0
  %1471 = vmatpush1.msra.mxu0 0.0
  %1472 = vmatprep.subr.mxu0 0.0
  %1473 = vmatpush1.msra.mxu0 0.0
  %1474 = vmatprep.subr.mxu0 0.0
  %1475 = vmatpush1.msra.mxu0 0.0
  %1476 = vmatprep.subr.mxu0 0.0
  %1477 = vmatpush1.msra.mxu0 0.0
  %1478 = vmatprep.subr.mxu0 0.0
  %1479 = vmatpush1.msra.mxu0 0.0
  %1480 = vmatprep.subr.mxu0 0.0
  %1481 = vmatpush1.msra.mxu0 0.0
  %1482 = vmatprep.subr.mxu0 0.0
  %1483 = vmatpush1.msra.mxu0 0.0
  %1484 = vmatprep.subr.mxu0 0.0
  %1485 = vmatpush1.msra.mxu0 0.0
  %1486 = vmatprep.subr.mxu0 0.0
  %1487 = vmatpush1.msra.mxu0 0.0
  %1488 = vmatprep.subr.mxu0 0.0
  %1489 = vmatpush1.msra.mxu0 0.0
  %1490 = vmatprep.subr.mxu0 0.0
  %1491 = vmatpush1.msra.mxu0 0.0
  %1492 = vmatprep.subr.mxu0 0.0
  %1493 = vmatpush1.msra.mxu0 0.0
  %1494 = vmatprep.subr.mxu0 0.0
  %1495 = vmatpush1.msra.mxu0 0.0
  %1496 = vmatprep.subr.mxu0 0.0
  %1497 = vmatpush1.msra.mxu0 0.0
  %1498 = vmatprep.subr.mxu0 0.0
  %1499 = vmatpush1.msra.mxu0 0.0
  %1500 = vmatprep.subr.mxu0 0.0
  %1501 = vmatpush1.msra.mxu0 0.0
  %1502 = vmatprep.subr.mxu0 0.0
  %1503 = vmatpush1.msra.mxu0 0.0
  %1504 = vmatprep.subr.mxu0 0.0
  %1505 = vmatpush1.msra.mxu0 0.0
  %1506 = vmatprep.subr.mxu0 0.0
  %1507 = vmatpush1.msra.mxu0 0.0
  %1508 = vmatprep.subr.mxu0 0.0
  %1509 = vmatpush1.msra.mxu0 0.0
  %1510 = vmatprep.subr.mxu0 0.0
  %1511 = vmatpush1.msra.mxu0 0.0
  %1512 = vmatprep.subr.mxu0 0.0
  %1513 = vmatpush1.msra.mxu0 0.0
  %1514 = vmatprep.subr.mxu0 0.0
  %1515 = vmatpush1.msra.mxu0 0.0
  %1516 = vmatprep.subr.mxu0 0.0
  %1517 = vmatpush1.msra.mxu0 0.0
  %1518 = vmatprep.subr.mxu0 0.0
  %1519 = vmatpush1.msra.mxu0 0.0
  %1520 = vmatprep.subr.mxu0 0.0
  %1521 = vmatpush1.msra.mxu0 0.0
  %1522 = vmatprep.subr.mxu0 0.0
  %1523 = vmatpush1.msra.mxu0 0.0
  %1524 = vmatprep.subr.mxu0 0.0
  %1525 = vmatpush1.msra.mxu0 0.0
  %1526 = vmatprep.subr.mxu0 0.0
  %1527 = vmatpush1.msra.mxu0 0.0
  %1528 = vmatprep.subr.mxu0 0.0
  %1529 = vmatpush1.msra.mxu0 0.0
  %1530 = vmatprep.mubr.f32.mxu0 0.0
  %1531 = vmatmul.mubr.f32.gmra.mrb[0].mxu0 %v1310
  %v1532 = vpop.f32.mrb[0].mxu0
  %v1533 = vadd.f32 0.0, %v1532
  %v1534 = vpop.f32.mrb[0].mxu0
  %v1535 = vadd.f32 0.0, %v1534
  %1536 = vdwg.mxu0
  %v1537 = vadd.f32 %v1280, %v1391
  %v1538 = vadd.f32 %v1281, %v1393
  %v1539 = vadd.f32 %v1282, %v1462
  %v1540 = vadd.f32 %v1283, %v1464
  %v1541 = vadd.f32 %v1284, %v1533
  %v1542 = vadd.f32 %v1285, %v1535
  %s1543 = scalar_lea.vmem %s1, 48
  %v1544 = vld [vmem:[%s1543] sm:$0xff]
  %1545 = vrot.lane.b32.xlu0 %v22, 92
  %v1546 = vpop.permute.xlu0 %1545
  %1547 = vrot.lane.b32.xlu0 %v33, 92
  %v1548 = vpop.permute.xlu0 %1547
  %1549 = vrot.lane.b32.xlu0 %v23, 92
  %v1550 = vpop.permute.xlu0 %1549
  %1551 = vrot.lane.b32.xlu0 %v34, 92
  %v1552 = vpop.permute.xlu0 %1551
  %1553 = vrot.lane.b32.xlu0 %v24, 92
  %v1554 = vpop.permute.xlu0 %1553
  %1555 = vrot.lane.b32.xlu0 %v35, 92
  %v1556 = vpop.permute.xlu0 %1555
  %1557 = vrot.lane.b32.xlu0 %v25, 92
  %v1558 = vpop.permute.xlu0 %1557
  %vm1559 = vcmask 752640
  %v1560 = vsel %vm1559, %v1546, %v1548
  %v1561 = vsel %vm1559, %v1548, %v1550
  %v1562 = vsel %vm1559, %v1550, %v1552
  %v1563 = vsel %vm1559, %v1552, %v1554
  %v1564 = vsel %vm1559, %v1554, %v1556
  %v1565 = vsel %vm1559, %v1556, %v1558
  %v1567 = vsel %vm57, %v1544, 0
  %v1569 = vsel %vm61, %v1560, 0
  %v1571 = vsel %vm61, %v1561, 0
  %v1573 = vsel %vm61, %v1562, 0
  %v1575 = vsel %vm61, %v1563, 0
  %v1577 = vsel %vm61, %v1564, 0
  %v1579 = vsel %vm61, %v1565, 0
  %1581 = vmatprep.subr.mxu0 %v1571
  %1582 = vmatpush1.msra.mxu0 %v1569
  %1583 = vmatprep.subr.mxu0 0.0
  %1584 = vmatpush1.msra.mxu0 0.0
  %1585 = vmatprep.subr.mxu0 0.0
  %1586 = vmatpush1.msra.mxu0 0.0
  %1587 = vmatprep.subr.mxu0 0.0
  %1588 = vmatpush1.msra.mxu0 0.0
  %1589 = vmatprep.subr.mxu0 0.0
  %1590 = vmatpush1.msra.mxu0 0.0
  %1591 = vmatprep.subr.mxu0 0.0
  %1592 = vmatpush1.msra.mxu0 0.0
  %1593 = vmatprep.subr.mxu0 0.0
  %1594 = vmatpush1.msra.mxu0 0.0
  %1595 = vmatprep.subr.mxu0 0.0
  %1596 = vmatpush1.msra.mxu0 0.0
  %1597 = vmatprep.subr.mxu0 0.0
  %1598 = vmatpush1.msra.mxu0 0.0
  %1599 = vmatprep.subr.mxu0 0.0
  %1600 = vmatpush1.msra.mxu0 0.0
  %1601 = vmatprep.subr.mxu0 0.0
  %1602 = vmatpush1.msra.mxu0 0.0
  %1603 = vmatprep.subr.mxu0 0.0
  %1604 = vmatpush1.msra.mxu0 0.0
  %1605 = vmatprep.subr.mxu0 0.0
  %1606 = vmatpush1.msra.mxu0 0.0
  %1607 = vmatprep.subr.mxu0 0.0
  %1608 = vmatpush1.msra.mxu0 0.0
  %1609 = vmatprep.subr.mxu0 0.0
  %1610 = vmatpush1.msra.mxu0 0.0
  %1611 = vmatprep.subr.mxu0 0.0
  %1612 = vmatpush1.msra.mxu0 0.0
  %1613 = vmatprep.subr.mxu0 0.0
  %1614 = vmatpush1.msra.mxu0 0.0
  %1615 = vmatprep.subr.mxu0 0.0
  %1616 = vmatpush1.msra.mxu0 0.0
  %1617 = vmatprep.subr.mxu0 0.0
  %1618 = vmatpush1.msra.mxu0 0.0
  %1619 = vmatprep.subr.mxu0 0.0
  %1620 = vmatpush1.msra.mxu0 0.0
  %1621 = vmatprep.subr.mxu0 0.0
  %1622 = vmatpush1.msra.mxu0 0.0
  %1623 = vmatprep.subr.mxu0 0.0
  %1624 = vmatpush1.msra.mxu0 0.0
  %1625 = vmatprep.subr.mxu0 0.0
  %1626 = vmatpush1.msra.mxu0 0.0
  %1627 = vmatprep.subr.mxu0 0.0
  %1628 = vmatpush1.msra.mxu0 0.0
  %1629 = vmatprep.subr.mxu0 0.0
  %1630 = vmatpush1.msra.mxu0 0.0
  %1631 = vmatprep.subr.mxu0 0.0
  %1632 = vmatpush1.msra.mxu0 0.0
  %1633 = vmatprep.subr.mxu0 0.0
  %1634 = vmatpush1.msra.mxu0 0.0
  %1635 = vmatprep.subr.mxu0 0.0
  %1636 = vmatpush1.msra.mxu0 0.0
  %1637 = vmatprep.subr.mxu0 0.0
  %1638 = vmatpush1.msra.mxu0 0.0
  %1639 = vmatprep.subr.mxu0 0.0
  %1640 = vmatpush1.msra.mxu0 0.0
  %1641 = vmatprep.subr.mxu0 0.0
  %1642 = vmatpush1.msra.mxu0 0.0
  %1643 = vmatprep.subr.mxu0 0.0
  %1644 = vmatpush1.msra.mxu0 0.0
  %1645 = vmatprep.mubr.f32.mxu0 0.0
  %1646 = vmatmul.mubr.f32.gmra.mrb[0].mxu0 %v1567
  %v1647 = vpop.f32.mrb[0].mxu0
  %v1648 = vadd.f32 0.0, %v1647
  %v1649 = vpop.f32.mrb[0].mxu0
  %v1650 = vadd.f32 0.0, %v1649
  %1651 = vdwg.mxu0
  %1652 = vmatprep.subr.mxu0 %v1575
  %1653 = vmatpush1.msra.mxu0 %v1573
  %1654 = vmatprep.subr.mxu0 0.0
  %1655 = vmatpush1.msra.mxu0 0.0
  %1656 = vmatprep.subr.mxu0 0.0
  %1657 = vmatpush1.msra.mxu0 0.0
  %1658 = vmatprep.subr.mxu0 0.0
  %1659 = vmatpush1.msra.mxu0 0.0
  %1660 = vmatprep.subr.mxu0 0.0
  %1661 = vmatpush1.msra.mxu0 0.0
  %1662 = vmatprep.subr.mxu0 0.0
  %1663 = vmatpush1.msra.mxu0 0.0
  %1664 = vmatprep.subr.mxu0 0.0
  %1665 = vmatpush1.msra.mxu0 0.0
  %1666 = vmatprep.subr.mxu0 0.0
  %1667 = vmatpush1.msra.mxu0 0.0
  %1668 = vmatprep.subr.mxu0 0.0
  %1669 = vmatpush1.msra.mxu0 0.0
  %1670 = vmatprep.subr.mxu0 0.0
  %1671 = vmatpush1.msra.mxu0 0.0
  %1672 = vmatprep.subr.mxu0 0.0
  %1673 = vmatpush1.msra.mxu0 0.0
  %1674 = vmatprep.subr.mxu0 0.0
  %1675 = vmatpush1.msra.mxu0 0.0
  %1676 = vmatprep.subr.mxu0 0.0
  %1677 = vmatpush1.msra.mxu0 0.0
  %1678 = vmatprep.subr.mxu0 0.0
  %1679 = vmatpush1.msra.mxu0 0.0
  %1680 = vmatprep.subr.mxu0 0.0
  %1681 = vmatpush1.msra.mxu0 0.0
  %1682 = vmatprep.subr.mxu0 0.0
  %1683 = vmatpush1.msra.mxu0 0.0
  %1684 = vmatprep.subr.mxu0 0.0
  %1685 = vmatpush1.msra.mxu0 0.0
  %1686 = vmatprep.subr.mxu0 0.0
  %1687 = vmatpush1.msra.mxu0 0.0
  %1688 = vmatprep.subr.mxu0 0.0
  %1689 = vmatpush1.msra.mxu0 0.0
  %1690 = vmatprep.subr.mxu0 0.0
  %1691 = vmatpush1.msra.mxu0 0.0
  %1692 = vmatprep.subr.mxu0 0.0
  %1693 = vmatpush1.msra.mxu0 0.0
  %1694 = vmatprep.subr.mxu0 0.0
  %1695 = vmatpush1.msra.mxu0 0.0
  %1696 = vmatprep.subr.mxu0 0.0
  %1697 = vmatpush1.msra.mxu0 0.0
  %1698 = vmatprep.subr.mxu0 0.0
  %1699 = vmatpush1.msra.mxu0 0.0
  %1700 = vmatprep.subr.mxu0 0.0
  %1701 = vmatpush1.msra.mxu0 0.0
  %1702 = vmatprep.subr.mxu0 0.0
  %1703 = vmatpush1.msra.mxu0 0.0
  %1704 = vmatprep.subr.mxu0 0.0
  %1705 = vmatpush1.msra.mxu0 0.0
  %1706 = vmatprep.subr.mxu0 0.0
  %1707 = vmatpush1.msra.mxu0 0.0
  %1708 = vmatprep.subr.mxu0 0.0
  %1709 = vmatpush1.msra.mxu0 0.0
  %1710 = vmatprep.subr.mxu0 0.0
  %1711 = vmatpush1.msra.mxu0 0.0
  %1712 = vmatprep.subr.mxu0 0.0
  %1713 = vmatpush1.msra.mxu0 0.0
  %1714 = vmatprep.subr.mxu0 0.0
  %1715 = vmatpush1.msra.mxu0 0.0
  %1716 = vmatprep.mubr.f32.mxu0 0.0
  %1717 = vmatmul.mubr.f32.gmra.mrb[0].mxu0 %v1567
  %v1718 = vpop.f32.mrb[0].mxu0
  %v1719 = vadd.f32 0.0, %v1718
  %v1720 = vpop.f32.mrb[0].mxu0
  %v1721 = vadd.f32 0.0, %v1720
  %1722 = vdwg.mxu0
  %1723 = vmatprep.subr.mxu0 %v1579
  %1724 = vmatpush1.msra.mxu0 %v1577
  %1725 = vmatprep.subr.mxu0 0.0
  %1726 = vmatpush1.msra.mxu0 0.0
  %1727 = vmatprep.subr.mxu0 0.0
  %1728 = vmatpush1.msra.mxu0 0.0
  %1729 = vmatprep.subr.mxu0 0.0
  %1730 = vmatpush1.msra.mxu0 0.0
  %1731 = vmatprep.subr.mxu0 0.0
  %1732 = vmatpush1.msra.mxu0 0.0
  %1733 = vmatprep.subr.mxu0 0.0
  %1734 = vmatpush1.msra.mxu0 0.0
  %1735 = vmatprep.subr.mxu0 0.0
  %1736 = vmatpush1.msra.mxu0 0.0
  %1737 = vmatprep.subr.mxu0 0.0
  %1738 = vmatpush1.msra.mxu0 0.0
  %1739 = vmatprep.subr.mxu0 0.0
  %1740 = vmatpush1.msra.mxu0 0.0
  %1741 = vmatprep.subr.mxu0 0.0
  %1742 = vmatpush1.msra.mxu0 0.0
  %1743 = vmatprep.subr.mxu0 0.0
  %1744 = vmatpush1.msra.mxu0 0.0
  %1745 = vmatprep.subr.mxu0 0.0
  %1746 = vmatpush1.msra.mxu0 0.0
  %1747 = vmatprep.subr.mxu0 0.0
  %1748 = vmatpush1.msra.mxu0 0.0
  %1749 = vmatprep.subr.mxu0 0.0
  %1750 = vmatpush1.msra.mxu0 0.0
  %1751 = vmatprep.subr.mxu0 0.0
  %1752 = vmatpush1.msra.mxu0 0.0
  %1753 = vmatprep.subr.mxu0 0.0
  %1754 = vmatpush1.msra.mxu0 0.0
  %1755 = vmatprep.subr.mxu0 0.0
  %1756 = vmatpush1.msra.mxu0 0.0
  %1757 = vmatprep.subr.mxu0 0.0
  %1758 = vmatpush1.msra.mxu0 0.0
  %1759 = vmatprep.subr.mxu0 0.0
  %1760 = vmatpush1.msra.mxu0 0.0
  %1761 = vmatprep.subr.mxu0 0.0
  %1762 = vmatpush1.msra.mxu0 0.0
  %1763 = vmatprep.subr.mxu0 0.0
  %1764 = vmatpush1.msra.mxu0 0.0
  %1765 = vmatprep.subr.mxu0 0.0
  %1766 = vmatpush1.msra.mxu0 0.0
  %1767 = vmatprep.subr.mxu0 0.0
  %1768 = vmatpush1.msra.mxu0 0.0
  %1769 = vmatprep.subr.mxu0 0.0
  %1770 = vmatpush1.msra.mxu0 0.0
  %1771 = vmatprep.subr.mxu0 0.0
  %1772 = vmatpush1.msra.mxu0 0.0
  %1773 = vmatprep.subr.mxu0 0.0
  %1774 = vmatpush1.msra.mxu0 0.0
  %1775 = vmatprep.subr.mxu0 0.0
  %1776 = vmatpush1.msra.mxu0 0.0
  %1777 = vmatprep.subr.mxu0 0.0
  %1778 = vmatpush1.msra.mxu0 0.0
  %1779 = vmatprep.subr.mxu0 0.0
  %1780 = vmatpush1.msra.mxu0 0.0
  %1781 = vmatprep.subr.mxu0 0.0
  %1782 = vmatpush1.msra.mxu0 0.0
  %1783 = vmatprep.subr.mxu0 0.0
  %1784 = vmatpush1.msra.mxu0 0.0
  %1785 = vmatprep.subr.mxu0 0.0
  %1786 = vmatpush1.msra.mxu0 0.0
  %1787 = vmatprep.mubr.f32.mxu0 0.0
  %1788 = vmatmul.mubr.f32.gmra.mrb[0].mxu0 %v1567
  %v1789 = vpop.f32.mrb[0].mxu0
  %v1790 = vadd.f32 0.0, %v1789
  %v1791 = vpop.f32.mrb[0].mxu0
  %v1792 = vadd.f32 0.0, %v1791
  %1793 = vdwg.mxu0
  %v1794 = vadd.f32 %v1537, %v1648
  %v1795 = vadd.f32 %v1538, %v1650
  %v1796 = vadd.f32 %v1539, %v1719
  %v1797 = vadd.f32 %v1540, %v1721
  %v1798 = vadd.f32 %v1541, %v1790
  %v1799 = vadd.f32 %v1542, %v1792
  %s1800 = scalar_lea.vmem %s1, 56
  %v1801 = vld [vmem:[%s1800] sm:$0xff]
  %1802 = vrot.lane.b32.xlu0 %v22, 91
  %v1803 = vpop.permute.xlu0 %1802
  %1804 = vrot.lane.b32.xlu0 %v33, 91
  %v1805 = vpop.permute.xlu0 %1804
  %1806 = vrot.lane.b32.xlu0 %v23, 91
  %v1807 = vpop.permute.xlu0 %1806
  %1808 = vrot.lane.b32.xlu0 %v34, 91
  %v1809 = vpop.permute.xlu0 %1808
  %1810 = vrot.lane.b32.xlu0 %v24, 91
  %v1811 = vpop.permute.xlu0 %1810
  %1812 = vrot.lane.b32.xlu0 %v35, 91
  %v1813 = vpop.permute.xlu0 %1812
  %1814 = vrot.lane.b32.xlu0 %v25, 91
  %v1815 = vpop.permute.xlu0 %1814
  %vm1816 = vcmask 744448
  %v1817 = vsel %vm1816, %v1803, %v1805
  %v1818 = vsel %vm1816, %v1805, %v1807
  %v1819 = vsel %vm1816, %v1807, %v1809
  %v1820 = vsel %vm1816, %v1809, %v1811
  %v1821 = vsel %vm1816, %v1811, %v1813
  %v1822 = vsel %vm1816, %v1813, %v1815
  %v1824 = vsel %vm57, %v1801, 0
  %v1826 = vsel %vm61, %v1817, 0
  %v1828 = vsel %vm61, %v1818, 0
  %v1830 = vsel %vm61, %v1819, 0
  %v1832 = vsel %vm61, %v1820, 0
  %v1834 = vsel %vm61, %v1821, 0
  %v1836 = vsel %vm61, %v1822, 0
  %1838 = vmatprep.subr.mxu0 %v1828
  %1839 = vmatpush1.msra.mxu0 %v1826
  %1840 = vmatprep.subr.mxu0 0.0
  %1841 = vmatpush1.msra.mxu0 0.0
  %1842 = vmatprep.subr.mxu0 0.0
  %1843 = vmatpush1.msra.mxu0 0.0
  %1844 = vmatprep.subr.mxu0 0.0
  %1845 = vmatpush1.msra.mxu0 0.0
  %1846 = vmatprep.subr.mxu0 0.0
  %1847 = vmatpush1.msra.mxu0 0.0
  %1848 = vmatprep.subr.mxu0 0.0
  %1849 = vmatpush1.msra.mxu0 0.0
  %1850 = vmatprep.subr.mxu0 0.0
  %1851 = vmatpush1.msra.mxu0 0.0
  %1852 = vmatprep.subr.mxu0 0.0
  %1853 = vmatpush1.msra.mxu0 0.0
  %1854 = vmatprep.subr.mxu0 0.0
  %1855 = vmatpush1.msra.mxu0 0.0
  %1856 = vmatprep.subr.mxu0 0.0
  %1857 = vmatpush1.msra.mxu0 0.0
  %1858 = vmatprep.subr.mxu0 0.0
  %1859 = vmatpush1.msra.mxu0 0.0
  %1860 = vmatprep.subr.mxu0 0.0
  %1861 = vmatpush1.msra.mxu0 0.0
  %1862 = vmatprep.subr.mxu0 0.0
  %1863 = vmatpush1.msra.mxu0 0.0
  %1864 = vmatprep.subr.mxu0 0.0
  %1865 = vmatpush1.msra.mxu0 0.0
  %1866 = vmatprep.subr.mxu0 0.0
  %1867 = vmatpush1.msra.mxu0 0.0
  %1868 = vmatprep.subr.mxu0 0.0
  %1869 = vmatpush1.msra.mxu0 0.0
  %1870 = vmatprep.subr.mxu0 0.0
  %1871 = vmatpush1.msra.mxu0 0.0
  %1872 = vmatprep.subr.mxu0 0.0
  %1873 = vmatpush1.msra.mxu0 0.0
  %1874 = vmatprep.subr.mxu0 0.0
  %1875 = vmatpush1.msra.mxu0 0.0
  %1876 = vmatprep.subr.mxu0 0.0
  %1877 = vmatpush1.msra.mxu0 0.0
  %1878 = vmatprep.subr.mxu0 0.0
  %1879 = vmatpush1.msra.mxu0 0.0
  %1880 = vmatprep.subr.mxu0 0.0
  %1881 = vmatpush1.msra.mxu0 0.0
  %1882 = vmatprep.subr.mxu0 0.0
  %1883 = vmatpush1.msra.mxu0 0.0
  %1884 = vmatprep.subr.mxu0 0.0
  %1885 = vmatpush1.msra.mxu0 0.0
  %1886 = vmatprep.subr.mxu0 0.0
  %1887 = vmatpush1.msra.mxu0 0.0
  %1888 = vmatprep.subr.mxu0 0.0
  %1889 = vmatpush1.msra.mxu0 0.0
  %1890 = vmatprep.subr.mxu0 0.0
  %1891 = vmatpush1.msra.mxu0 0.0
  %1892 = vmatprep.subr.mxu0 0.0
  %1893 = vmatpush1.msra.mxu0 0.0
  %1894 = vmatprep.subr.mxu0 0.0
  %1895 = vmatpush1.msra.mxu0 0.0
  %1896 = vmatprep.subr.mxu0 0.0
  %1897 = vmatpush1.msra.mxu0 0.0
  %1898 = vmatprep.subr.mxu0 0.0
  %1899 = vmatpush1.msra.mxu0 0.0
  %1900 = vmatprep.subr.mxu0 0.0
  %1901 = vmatpush1.msra.mxu0 0.0
  %1902 = vmatprep.mubr.f32.mxu0 0.0
  %1903 = vmatmul.mubr.f32.gmra.mrb[0].mxu0 %v1824
  %v1904 = vpop.f32.mrb[0].mxu0
  %v1905 = vadd.f32 0.0, %v1904
  %v1906 = vpop.f32.mrb[0].mxu0
  %v1907 = vadd.f32 0.0, %v1906
  %1908 = vdwg.mxu0
  %1909 = vmatprep.subr.mxu0 %v1832
  %1910 = vmatpush1.msra.mxu0 %v1830
  %1911 = vmatprep.subr.mxu0 0.0
  %1912 = vmatpush1.msra.mxu0 0.0
  %1913 = vmatprep.subr.mxu0 0.0
  %1914 = vmatpush1.msra.mxu0 0.0
  %1915 = vmatprep.subr.mxu0 0.0
  %1916 = vmatpush1.msra.mxu0 0.0
  %1917 = vmatprep.subr.mxu0 0.0
  %1918 = vmatpush1.msra.mxu0 0.0
  %1919 = vmatprep.subr.mxu0 0.0
  %1920 = vmatpush1.msra.mxu0 0.0
  %1921 = vmatprep.subr.mxu0 0.0
  %1922 = vmatpush1.msra.mxu0 0.0
  %1923 = vmatprep.subr.mxu0 0.0
  %1924 = vmatpush1.msra.mxu0 0.0
  %1925 = vmatprep.subr.mxu0 0.0
  %1926 = vmatpush1.msra.mxu0 0.0
  %1927 = vmatprep.subr.mxu0 0.0
  %1928 = vmatpush1.msra.mxu0 0.0
  %1929 = vmatprep.subr.mxu0 0.0
  %1930 = vmatpush1.msra.mxu0 0.0
  %1931 = vmatprep.subr.mxu0 0.0
  %1932 = vmatpush1.msra.mxu0 0.0
  %1933 = vmatprep.subr.mxu0 0.0
  %1934 = vmatpush1.msra.mxu0 0.0
  %1935 = vmatprep.subr.mxu0 0.0
  %1936 = vmatpush1.msra.mxu0 0.0
  %1937 = vmatprep.subr.mxu0 0.0
  %1938 = vmatpush1.msra.mxu0 0.0
  %1939 = vmatprep.subr.mxu0 0.0
  %1940 = vmatpush1.msra.mxu0 0.0
  %1941 = vmatprep.subr.mxu0 0.0
  %1942 = vmatpush1.msra.mxu0 0.0
  %1943 = vmatprep.subr.mxu0 0.0
  %1944 = vmatpush1.msra.mxu0 0.0
  %1945 = vmatprep.subr.mxu0 0.0
  %1946 = vmatpush1.msra.mxu0 0.0
  %1947 = vmatprep.subr.mxu0 0.0
  %1948 = vmatpush1.msra.mxu0 0.0
  %1949 = vmatprep.subr.mxu0 0.0
  %1950 = vmatpush1.msra.mxu0 0.0
  %1951 = vmatprep.subr.mxu0 0.0
  %1952 = vmatpush1.msra.mxu0 0.0
  %1953 = vmatprep.subr.mxu0 0.0
  %1954 = vmatpush1.msra.mxu0 0.0
  %1955 = vmatprep.subr.mxu0 0.0
  %1956 = vmatpush1.msra.mxu0 0.0
  %1957 = vmatprep.subr.mxu0 0.0
  %1958 = vmatpush1.msra.mxu0 0.0
  %1959 = vmatprep.subr.mxu0 0.0
  %1960 = vmatpush1.msra.mxu0 0.0
  %1961 = vmatprep.subr.mxu0 0.0
  %1962 = vmatpush1.msra.mxu0 0.0
  %1963 = vmatprep.subr.mxu0 0.0
  %1964 = vmatpush1.msra.mxu0 0.0
  %1965 = vmatprep.subr.mxu0 0.0
  %1966 = vmatpush1.msra.mxu0 0.0
  %1967 = vmatprep.subr.mxu0 0.0
  %1968 = vmatpush1.msra.mxu0 0.0
  %1969 = vmatprep.subr.mxu0 0.0
  %1970 = vmatpush1.msra.mxu0 0.0
  %1971 = vmatprep.subr.mxu0 0.0
  %1972 = vmatpush1.msra.mxu0 0.0
  %1973 = vmatprep.mubr.f32.mxu0 0.0
  %1974 = vmatmul.mubr.f32.gmra.mrb[0].mxu0 %v1824
  %v1975 = vpop.f32.mrb[0].mxu0
  %v1976 = vadd.f32 0.0, %v1975
  %v1977 = vpop.f32.mrb[0].mxu0
  %v1978 = vadd.f32 0.0, %v1977
  %1979 = vdwg.mxu0
  %1980 = vmatprep.subr.mxu0 %v1836
  %1981 = vmatpush1.msra.mxu0 %v1834
  %1982 = vmatprep.subr.mxu0 0.0
  %1983 = vmatpush1.msra.mxu0 0.0
  %1984 = vmatprep.subr.mxu0 0.0
  %1985 = vmatpush1.msra.mxu0 0.0
  %1986 = vmatprep.subr.mxu0 0.0
  %1987 = vmatpush1.msra.mxu0 0.0
  %1988 = vmatprep.subr.mxu0 0.0
  %1989 = vmatpush1.msra.mxu0 0.0
  %1990 = vmatprep.subr.mxu0 0.0
  %1991 = vmatpush1.msra.mxu0 0.0
  %1992 = vmatprep.subr.mxu0 0.0
  %1993 = vmatpush1.msra.mxu0 0.0
  %1994 = vmatprep.subr.mxu0 0.0
  %1995 = vmatpush1.msra.mxu0 0.0
  %1996 = vmatprep.subr.mxu0 0.0
  %1997 = vmatpush1.msra.mxu0 0.0
  %1998 = vmatprep.subr.mxu0 0.0
  %1999 = vmatpush1.msra.mxu0 0.0
  %2000 = vmatprep.subr.mxu0 0.0
  %2001 = vmatpush1.msra.mxu0 0.0
  %2002 = vmatprep.subr.mxu0 0.0
  %2003 = vmatpush1.msra.mxu0 0.0
  %2004 = vmatprep.subr.mxu0 0.0
  %2005 = vmatpush1.msra.mxu0 0.0
  %2006 = vmatprep.subr.mxu0 0.0
  %2007 = vmatpush1.msra.mxu0 0.0
  %2008 = vmatprep.subr.mxu0 0.0
  %2009 = vmatpush1.msra.mxu0 0.0
  %2010 = vmatprep.subr.mxu0 0.0
  %2011 = vmatpush1.msra.mxu0 0.0
  %2012 = vmatprep.subr.mxu0 0.0
  %2013 = vmatpush1.msra.mxu0 0.0
  %2014 = vmatprep.subr.mxu0 0.0
  %2015 = vmatpush1.msra.mxu0 0.0
  %2016 = vmatprep.subr.mxu0 0.0
  %2017 = vmatpush1.msra.mxu0 0.0
  %2018 = vmatprep.subr.mxu0 0.0
  %2019 = vmatpush1.msra.mxu0 0.0
  %2020 = vmatprep.subr.mxu0 0.0
  %2021 = vmatpush1.msra.mxu0 0.0
  %2022 = vmatprep.subr.mxu0 0.0
  %2023 = vmatpush1.msra.mxu0 0.0
  %2024 = vmatprep.subr.mxu0 0.0
  %2025 = vmatpush1.msra.mxu0 0.0
  %2026 = vmatprep.subr.mxu0 0.0
  %2027 = vmatpush1.msra.mxu0 0.0
  %2028 = vmatprep.subr.mxu0 0.0
  %2029 = vmatpush1.msra.mxu0 0.0
  %2030 = vmatprep.subr.mxu0 0.0
  %2031 = vmatpush1.msra.mxu0 0.0
  %2032 = vmatprep.subr.mxu0 0.0
  %2033 = vmatpush1.msra.mxu0 0.0
  %2034 = vmatprep.subr.mxu0 0.0
  %2035 = vmatpush1.msra.mxu0 0.0
  %2036 = vmatprep.subr.mxu0 0.0
  %2037 = vmatpush1.msra.mxu0 0.0
  %2038 = vmatprep.subr.mxu0 0.0
  %2039 = vmatpush1.msra.mxu0 0.0
  %2040 = vmatprep.subr.mxu0 0.0
  %2041 = vmatpush1.msra.mxu0 0.0
  %2042 = vmatprep.subr.mxu0 0.0
  %2043 = vmatpush1.msra.mxu0 0.0
  %2044 = vmatprep.mubr.f32.mxu0 0.0
  %2045 = vmatmul.mubr.f32.gmra.mrb[0].mxu0 %v1824
  %v2046 = vpop.f32.mrb[0].mxu0
  %v2047 = vadd.f32 0.0, %v2046
  %v2048 = vpop.f32.mrb[0].mxu0
  %v2049 = vadd.f32 0.0, %v2048
  %2050 = vdwg.mxu0
  %v2051 = vadd.f32 %v1794, %v1905
  %v2052 = vadd.f32 %v1795, %v1907
  %v2053 = vadd.f32 %v1796, %v1976
  %v2054 = vadd.f32 %v1797, %v1978
  %v2055 = vadd.f32 %v1798, %v2047
  %v2056 = vadd.f32 %v1799, %v2049
  %s2057 = scalar_lea.vmem %s1, 64
  %v2058 = vld [vmem:[%s2057] sm:$0xff]
  %2059 = vrot.lane.b32.xlu0 %v22, 90
  %v2060 = vpop.permute.xlu0 %2059
  %2061 = vrot.lane.b32.xlu0 %v33, 90
  %v2062 = vpop.permute.xlu0 %2061
  %2063 = vrot.lane.b32.xlu0 %v23, 90
  %v2064 = vpop.permute.xlu0 %2063
  %2065 = vrot.lane.b32.xlu0 %v34, 90
  %v2066 = vpop.permute.xlu0 %2065
  %2067 = vrot.lane.b32.xlu0 %v24, 90
  %v2068 = vpop.permute.xlu0 %2067
  %2069 = vrot.lane.b32.xlu0 %v35, 90
  %v2070 = vpop.permute.xlu0 %2069
  %2071 = vrot.lane.b32.xlu0 %v25, 90
  %v2072 = vpop.permute.xlu0 %2071
  %vm2073 = vcmask 736256
  %v2074 = vsel %vm2073, %v2060, %v2062
  %v2075 = vsel %vm2073, %v2062, %v2064
  %v2076 = vsel %vm2073, %v2064, %v2066
  %v2077 = vsel %vm2073, %v2066, %v2068
  %v2078 = vsel %vm2073, %v2068, %v2070
  %v2079 = vsel %vm2073, %v2070, %v2072
  %v2081 = vsel %vm57, %v2058, 0
  %v2083 = vsel %vm61, %v2074, 0
  %v2085 = vsel %vm61, %v2075, 0
  %v2087 = vsel %vm61, %v2076, 0
  %v2089 = vsel %vm61, %v2077, 0
  %v2091 = vsel %vm61, %v2078, 0
  %v2093 = vsel %vm61, %v2079, 0
  %2095 = vmatprep.subr.mxu0 %v2085
  %2096 = vmatpush1.msra.mxu0 %v2083
  %2097 = vmatprep.subr.mxu0 0.0
  %2098 = vmatpush1.msra.mxu0 0.0
  %2099 = vmatprep.subr.mxu0 0.0
  %2100 = vmatpush1.msra.mxu0 0.0
  %2101 = vmatprep.subr.mxu0 0.0
  %2102 = vmatpush1.msra.mxu0 0.0
  %2103 = vmatprep.subr.mxu0 0.0
  %2104 = vmatpush1.msra.mxu0 0.0
  %2105 = vmatprep.subr.mxu0 0.0
  %2106 = vmatpush1.msra.mxu0 0.0
  %2107 = vmatprep.subr.mxu0 0.0
  %2108 = vmatpush1.msra.mxu0 0.0
  %2109 = vmatprep.subr.mxu0 0.0
  %2110 = vmatpush1.msra.mxu0 0.0
  %2111 = vmatprep.subr.mxu0 0.0
  %2112 = vmatpush1.msra.mxu0 0.0
  %2113 = vmatprep.subr.mxu0 0.0
  %2114 = vmatpush1.msra.mxu0 0.0
  %2115 = vmatprep.subr.mxu0 0.0
  %2116 = vmatpush1.msra.mxu0 0.0
  %2117 = vmatprep.subr.mxu0 0.0
  %2118 = vmatpush1.msra.mxu0 0.0
  %2119 = vmatprep.subr.mxu0 0.0
  %2120 = vmatpush1.msra.mxu0 0.0
  %2121 = vmatprep.subr.mxu0 0.0
  %2122 = vmatpush1.msra.mxu0 0.0
  %2123 = vmatprep.subr.mxu0 0.0
  %2124 = vmatpush1.msra.mxu0 0.0
  %2125 = vmatprep.subr.mxu0 0.0
  %2126 = vmatpush1.msra.mxu0 0.0
  %2127 = vmatprep.subr.mxu0 0.0
  %2128 = vmatpush1.msra.mxu0 0.0
  %2129 = vmatprep.subr.mxu0 0.0
  %2130 = vmatpush1.msra.mxu0 0.0
  %2131 = vmatprep.subr.mxu0 0.0
  %2132 = vmatpush1.msra.mxu0 0.0
  %2133 = vmatprep.subr.mxu0 0.0
  %2134 = vmatpush1.msra.mxu0 0.0
  %2135 = vmatprep.subr.mxu0 0.0
  %2136 = vmatpush1.msra.mxu0 0.0
  %2137 = vmatprep.subr.mxu0 0.0
  %2138 = vmatpush1.msra.mxu0 0.0
  %2139 = vmatprep.subr.mxu0 0.0
  %2140 = vmatpush1.msra.mxu0 0.0
  %2141 = vmatprep.subr.mxu0 0.0
  %2142 = vmatpush1.msra.mxu0 0.0
  %2143 = vmatprep.subr.mxu0 0.0
  %2144 = vmatpush1.msra.mxu0 0.0
  %2145 = vmatprep.subr.mxu0 0.0
  %2146 = vmatpush1.msra.mxu0 0.0
  %2147 = vmatprep.subr.mxu0 0.0
  %2148 = vmatpush1.msra.mxu0 0.0
  %2149 = vmatprep.subr.mxu0 0.0
  %2150 = vmatpush1.msra.mxu0 0.0
  %2151 = vmatprep.subr.mxu0 0.0
  %2152 = vmatpush1.msra.mxu0 0.0
  %2153 = vmatprep.subr.mxu0 0.0
  %2154 = vmatpush1.msra.mxu0 0.0
  %2155 = vmatprep.subr.mxu0 0.0
  %2156 = vmatpush1.msra.mxu0 0.0
  %2157 = vmatprep.subr.mxu0 0.0
  %2158 = vmatpush1.msra.mxu0 0.0
  %2159 = vmatprep.mubr.f32.mxu0 0.0
  %2160 = vmatmul.mubr.f32.gmra.mrb[0].mxu0 %v2081
  %v2161 = vpop.f32.mrb[0].mxu0
  %v2162 = vadd.f32 0.0, %v2161
  %v2163 = vpop.f32.mrb[0].mxu0
  %v2164 = vadd.f32 0.0, %v2163
  %2165 = vdwg.mxu0
  %2166 = vmatprep.subr.mxu0 %v2089
  %2167 = vmatpush1.msra.mxu0 %v2087
  %2168 = vmatprep.subr.mxu0 0.0
  %2169 = vmatpush1.msra.mxu0 0.0
  %2170 = vmatprep.subr.mxu0 0.0
  %2171 = vmatpush1.msra.mxu0 0.0
  %2172 = vmatprep.subr.mxu0 0.0
  %2173 = vmatpush1.msra.mxu0 0.0
  %2174 = vmatprep.subr.mxu0 0.0
  %2175 = vmatpush1.msra.mxu0 0.0
  %2176 = vmatprep.subr.mxu0 0.0
  %2177 = vmatpush1.msra.mxu0 0.0
  %2178 = vmatprep.subr.mxu0 0.0
  %2179 = vmatpush1.msra.mxu0 0.0
  %2180 = vmatprep.subr.mxu0 0.0
  %2181 = vmatpush1.msra.mxu0 0.0
  %2182 = vmatprep.subr.mxu0 0.0
  %2183 = vmatpush1.msra.mxu0 0.0
  %2184 = vmatprep.subr.mxu0 0.0
  %2185 = vmatpush1.msra.mxu0 0.0
  %2186 = vmatprep.subr.mxu0 0.0
  %2187 = vmatpush1.msra.mxu0 0.0
  %2188 = vmatprep.subr.mxu0 0.0
  %2189 = vmatpush1.msra.mxu0 0.0
  %2190 = vmatprep.subr.mxu0 0.0
  %2191 = vmatpush1.msra.mxu0 0.0
  %2192 = vmatprep.subr.mxu0 0.0
  %2193 = vmatpush1.msra.mxu0 0.0
  %2194 = vmatprep.subr.mxu0 0.0
  %2195 = vmatpush1.msra.mxu0 0.0
  %2196 = vmatprep.subr.mxu0 0.0
  %2197 = vmatpush1.msra.mxu0 0.0
  %2198 = vmatprep.subr.mxu0 0.0
  %2199 = vmatpush1.msra.mxu0 0.0
  %2200 = vmatprep.subr.mxu0 0.0
  %2201 = vmatpush1.msra.mxu0 0.0
  %2202 = vmatprep.subr.mxu0 0.0
  %2203 = vmatpush1.msra.mxu0 0.0
  %2204 = vmatprep.subr.mxu0 0.0
  %2205 = vmatpush1.msra.mxu0 0.0
  %2206 = vmatprep.subr.mxu0 0.0
  %2207 = vmatpush1.msra.mxu0 0.0
  %2208 = vmatprep.subr.mxu0 0.0
  %2209 = vmatpush1.msra.mxu0 0.0
  %2210 = vmatprep.subr.mxu0 0.0
  %2211 = vmatpush1.msra.mxu0 0.0
  %2212 = vmatprep.subr.mxu0 0.0
  %2213 = vmatpush1.msra.mxu0 0.0
  %2214 = vmatprep.subr.mxu0 0.0
  %2215 = vmatpush1.msra.mxu0 0.0
  %2216 = vmatprep.subr.mxu0 0.0
  %2217 = vmatpush1.msra.mxu0 0.0
  %2218 = vmatprep.subr.mxu0 0.0
  %2219 = vmatpush1.msra.mxu0 0.0
  %2220 = vmatprep.subr.mxu0 0.0
  %2221 = vmatpush1.msra.mxu0 0.0
  %2222 = vmatprep.subr.mxu0 0.0
  %2223 = vmatpush1.msra.mxu0 0.0
  %2224 = vmatprep.subr.mxu0 0.0
  %2225 = vmatpush1.msra.mxu0 0.0
  %2226 = vmatprep.subr.mxu0 0.0
  %2227 = vmatpush1.msra.mxu0 0.0
  %2228 = vmatprep.subr.mxu0 0.0
  %2229 = vmatpush1.msra.mxu0 0.0
  %2230 = vmatprep.mubr.f32.mxu0 0.0
  %2231 = vmatmul.mubr.f32.gmra.mrb[0].mxu0 %v2081
  %v2232 = vpop.f32.mrb[0].mxu0
  %v2233 = vadd.f32 0.0, %v2232
  %v2234 = vpop.f32.mrb[0].mxu0
  %v2235 = vadd.f32 0.0, %v2234
  %2236 = vdwg.mxu0
  %2237 = vmatprep.subr.mxu0 %v2093
  %2238 = vmatpush1.msra.mxu0 %v2091
  %2239 = vmatprep.subr.mxu0 0.0
  %2240 = vmatpush1.msra.mxu0 0.0
  %2241 = vmatprep.subr.mxu0 0.0
  %2242 = vmatpush1.msra.mxu0 0.0
  %2243 = vmatprep.subr.mxu0 0.0
  %2244 = vmatpush1.msra.mxu0 0.0
  %2245 = vmatprep.subr.mxu0 0.0
  %2246 = vmatpush1.msra.mxu0 0.0
  %2247 = vmatprep.subr.mxu0 0.0
  %2248 = vmatpush1.msra.mxu0 0.0
  %2249 = vmatprep.subr.mxu0 0.0
  %2250 = vmatpush1.msra.mxu0 0.0
  %2251 = vmatprep.subr.mxu0 0.0
  %2252 = vmatpush1.msra.mxu0 0.0
  %2253 = vmatprep.subr.mxu0 0.0
  %2254 = vmatpush1.msra.mxu0 0.0
  %2255 = vmatprep.subr.mxu0 0.0
  %2256 = vmatpush1.msra.mxu0 0.0
  %2257 = vmatprep.subr.mxu0 0.0
  %2258 = vmatpush1.msra.mxu0 0.0
  %2259 = vmatprep.subr.mxu0 0.0
  %2260 = vmatpush1.msra.mxu0 0.0
  %2261 = vmatprep.subr.mxu0 0.0
  %2262 = vmatpush1.msra.mxu0 0.0
  %2263 = vmatprep.subr.mxu0 0.0
  %2264 = vmatpush1.msra.mxu0 0.0
  %2265 = vmatprep.subr.mxu0 0.0
  %2266 = vmatpush1.msra.mxu0 0.0
  %2267 = vmatprep.subr.mxu0 0.0
  %2268 = vmatpush1.msra.mxu0 0.0
  %2269 = vmatprep.subr.mxu0 0.0
  %2270 = vmatpush1.msra.mxu0 0.0
  %2271 = vmatprep.subr.mxu0 0.0
  %2272 = vmatpush1.msra.mxu0 0.0
  %2273 = vmatprep.subr.mxu0 0.0
  %2274 = vmatpush1.msra.mxu0 0.0
  %2275 = vmatprep.subr.mxu0 0.0
  %2276 = vmatpush1.msra.mxu0 0.0
  %2277 = vmatprep.subr.mxu0 0.0
  %2278 = vmatpush1.msra.mxu0 0.0
  %2279 = vmatprep.subr.mxu0 0.0
  %2280 = vmatpush1.msra.mxu0 0.0
  %2281 = vmatprep.subr.mxu0 0.0
  %2282 = vmatpush1.msra.mxu0 0.0
  %2283 = vmatprep.subr.mxu0 0.0
  %2284 = vmatpush1.msra.mxu0 0.0
  %2285 = vmatprep.subr.mxu0 0.0
  %2286 = vmatpush1.msra.mxu0 0.0
  %2287 = vmatprep.subr.mxu0 0.0
  %2288 = vmatpush1.msra.mxu0 0.0
  %2289 = vmatprep.subr.mxu0 0.0
  %2290 = vmatpush1.msra.mxu0 0.0
  %2291 = vmatprep.subr.mxu0 0.0
  %2292 = vmatpush1.msra.mxu0 0.0
  %2293 = vmatprep.subr.mxu0 0.0
  %2294 = vmatpush1.msra.mxu0 0.0
  %2295 = vmatprep.subr.mxu0 0.0
  %2296 = vmatpush1.msra.mxu0 0.0
  %2297 = vmatprep.subr.mxu0 0.0
  %2298 = vmatpush1.msra.mxu0 0.0
  %2299 = vmatprep.subr.mxu0 0.0
  %2300 = vmatpush1.msra.mxu0 0.0
  %2301 = vmatprep.mubr.f32.mxu0 0.0
  %2302 = vmatmul.mubr.f32.gmra.mrb[0].mxu0 %v2081
  %v2303 = vpop.f32.mrb[0].mxu0
  %v2304 = vadd.f32 0.0, %v2303
  %v2305 = vpop.f32.mrb[0].mxu0
  %v2306 = vadd.f32 0.0, %v2305
  %2307 = vdwg.mxu0
  %v2308 = vadd.f32 %v2051, %v2162
  %v2309 = vadd.f32 %v2052, %v2164
  %v2310 = vadd.f32 %v2053, %v2233
  %v2311 = vadd.f32 %v2054, %v2235
  %v2312 = vadd.f32 %v2055, %v2304
  %v2313 = vadd.f32 %v2056, %v2306
  %v2314 = vld [vmem:[%s2] sm:$0xff]
  %2316 = vset.pattern.permute.xlu0 0
  %2317 = vperm.xlu0 %2316, %v2314
  %v2318 = vpop.permute.xlu0 %2317
  %v2320 = vadd.f32 %v2308, %v2318
  %v2321 = vadd.f32 %v2309, %v2318
  %v2322 = vadd.f32 %v2310, %v2318
  %v2323 = vadd.f32 %v2311, %v2318
  %v2324 = vadd.f32 %v2312, %v2318
  %v2325 = vadd.f32 %v2313, %v2318
  %v2326 = vcvt.f32.s32.to.zero.pseudo %v2320
  %v2327 = vcvt.f32.s32.to.zero.pseudo %v2321
  %v2328 = vcvt.f32.s32.to.zero.pseudo %v2322
  %v2329 = vcvt.f32.s32.to.zero.pseudo %v2323
  %v2330 = vcvt.f32.s32.to.zero.pseudo %v2324
  %v2331 = vcvt.f32.s32.to.zero.pseudo %v2325
  %v2332 = vand.u32 %v2326, 255
  %v2333 = vand.u32 %v2327, 255
  %v2334 = vand.u32 %v2328, 255
  %v2335 = vand.u32 %v2329, 255
  %v2336 = vand.u32 %v2330, 255
  %v2337 = vand.u32 %v2331, 255
  %2338 = vst [vmem:[%s3] sm:$0xff] %v2332
  %2339 = vst [vmem:[%s3 + $0x8] sm:$0xff] %v2333
  %2340 = vst [vmem:[%s3 + $0x10] sm:$0xff] %v2334
  %2341 = vst [vmem:[%s3 + $0x18] sm:$0xff] %v2335
  %2342 = vst [vmem:[%s3 + $0x20] sm:$0xff] %v2336
  %2343 = vst [vmem:[%s3 + $0x28] sm:$0xff] %v2337
  // Predicated region
  $region14: #{qlayer_conv2d_truncate.1} parent=0 // pred_check
    _
  $region15: #{qlayer_conv2d_truncate.1} parent=0 // pred_check_branch
    %2345 = sbr.rel (0) target = $region17
  $region16: #{qlayer_conv2d_truncate.1} parent=0 // pred_region
    _
  $region17: #{qlayer_conv2d_truncate.1} parent=0 // pred_fallthru
    _
  // Predicated region
  $region18: #{qlayer_conv2d_truncate.1} parent=0 // pred_check
    _
  $region19: #{qlayer_conv2d_truncate.1} parent=0 // pred_check_branch
    %2347 = sbr.rel (0) target = $region21
  $region20: #{qlayer_conv2d_truncate.1} parent=0 // pred_region
    _
  $region21: #{qlayer_conv2d_truncate.1} parent=0 // pred_fallthru
    _

</llo_original>
